<compile_context>
chip_gen: v5e
topology: v5e:2x2
jax: 0.10.0
libtpu: 0.0.40
codegen_flags: <defaults>
</compile_context>

<pallas_src>
import functools
import math

import jax
import jax.numpy as jnp
from jax.experimental import pallas as pl
from jax.experimental.pallas import tpu as pltpu


# ----------------------------------------------------------------------------
# Kernel
# ----------------------------------------------------------------------------
def _layernorm(x, gamma, beta, eps=1e-5):
    mu = jnp.mean(x, axis=-1, keepdims=True)
    d = x - mu
    var = jnp.mean(d * d, axis=-1, keepdims=True)
    return d * jax.lax.rsqrt(var + eps) * gamma + beta


def fused_forward_kernel(ids_ref, mask_ref, emb_ref,
                         wq_ref, bq_ref, wk_ref, bk_ref, wv_ref, bv_ref,
                         wo_ref, bo_ref, g1_ref, be1_ref,
                         w1_ref, b1_ref, w2_ref, b2_ref, g2_ref, be2_ref,
                         fcw_ref, fcb_ref,
                         out_ref, *, batch, seq_len, num_heads):
    B, S, H = batch, seq_len, num_heads
    V, E = emb_ref.shape
    L = wq_ref.shape[0]
    Dh = E // H
    BS = B * S
    HB = H * B
    scale = 1.0 / math.sqrt(Dh)

    # ---- embedding lookup as an exact one-hot matmul -----------------------
    # (row 0 of the table is all-zero => padding_idx=0 behaviour preserved)
    # TODO(synk): at real vocab sizes replace with a scalar-prefetch row
    # gather (PrefetchScalarGridSpec / per-row DMA) — one-hot is only OK at
    # V=16 and would force the full (V, E) table into VMEM otherwise.
    ids = ids_ref[...]                                                # (BS, 1)
    iota = jax.lax.broadcasted_iota(jnp.int32, (BS, V), 1)
    onehot = (iota == ids).astype(jnp.float32)
    x = jnp.dot(onehot, emb_ref[...], preferred_element_type=jnp.float32)  # (BS, E)

    # ---- key-padding bias, hoisted out of the layer loop --------------------
    # Head-major (H*B, 1, S); broadcast over the query dim inside the score
    # add — the (H*B, S, S) bias tensor is never materialized.
    neg = jnp.where(mask_ref[...] == 0, -1e30, 0.0).astype(jnp.float32)   # (B, S)
    bias = jnp.concatenate([neg.reshape(B, 1, S)] * H, axis=0)            # (H*B, 1, S)

    # Head-major rearrangement helpers: static 8-lane slices + leading-dim
    # reshapes + axis-0 / lane concats only (no (BS,H,Dh) relayout, no 4-D
    # transposes).
    def split_heads(t):                                   # (BS, E) -> (H*B, S, Dh)
        return jnp.concatenate(
            [t[:, h * Dh:(h + 1) * Dh].reshape(B, S, Dh) for h in range(H)],
            axis=0)

    def merge_heads(t):                                   # (H*B, S, Dh) -> (BS, E)
        return jnp.concatenate(
            [t[h * B:(h + 1) * B].reshape(BS, Dh) for h in range(H)],
            axis=-1)

    # NOTE: the PyTorch reference applies no rotary embedding despite the
    # module name, so none is applied here.
    # TODO(synk): when scaling E/F/L, turn this static unroll into a grid axis
    # marked "arbitrary" with per-layer weight BlockSpecs (stream one layer's
    # weights at a time, double-buffered) instead of holding all L layers in
    # VMEM.
    for l in range(L):                                    # static unroll (L small)
        # ---- full-width Q/K/V projections (K = E matmuls) -------------------
        q = (jnp.dot(x, wq_ref[l], preferred_element_type=jnp.float32)
             + bq_ref[l]) * scale
        k = jnp.dot(x, wk_ref[l], preferred_element_type=jnp.float32) + bk_ref[l]
        v = jnp.dot(x, wv_ref[l], preferred_element_type=jnp.float32) + bv_ref[l]

        qh = split_heads(q)                               # (H*B, S, Dh)
        kh = split_heads(k)
        vh = split_heads(v)

        # ---- ONE head-batched score / softmax / context per layer ----------
        s = jnp.einsum('bqd,bkd->bqk', qh, kh,
                       preferred_element_type=jnp.float32) + bias     # (H*B, S, S)
        s_max = jnp.max(s, axis=-1, keepdims=True)        # stable softmax
        e = jnp.exp(s - s_max)
        # Exact reciprocal: keeps attention rows summing to 1 like the
        # PyTorch reference (approx=True was flagged as a numerics risk).
        p = e / jnp.sum(e, axis=-1, keepdims=True)
        ctx = jnp.einsum('bqk,bkd->bqd', p, vh,
                         preferred_element_type=jnp.float32)          # (H*B, S, Dh)

        # ---- reassemble heads on the lane dim, ONE K=E output projection ----
        attn = jnp.dot(merge_heads(ctx), wo_ref[l],
                       preferred_element_type=jnp.float32) + bo_ref[l]

        # ---- residual + LayerNorm 1 -----------------------------------------
        y = _layernorm(x + attn, g1_ref[l], be1_ref[l])

        # ---- feed-forward (ReLU) + residual + LayerNorm 2 ---------------------
        hdn = jnp.maximum(
            jnp.dot(y, w1_ref[l], preferred_element_type=jnp.float32) + b1_ref[l],
            0.0)
        ffn = jnp.dot(hdn, w2_ref[l], preferred_element_type=jnp.float32) + b2_ref[l]
        x = _layernorm(y + ffn, g2_ref[l], be2_ref[l])

    # ---- mean over sequence (includes padded positions, as in the ref) ------
    pooled = jnp.sum(x.reshape(B, S, E), axis=1) * (1.0 / S)              # (B, E)
    out_ref[...] = (jnp.sum(pooled * fcw_ref[...], axis=-1, keepdims=True)
                    + fcb_ref[...])                                       # (B, 1)


# ----------------------------------------------------------------------------
# Wrapper (glue)
# ----------------------------------------------------------------------------
def _vmem_spec():
    return pl.BlockSpec(memory_space=pltpu.MemorySpace.VMEM)


def global_rope_transformer_forward(x_ids, mask, params, num_heads):
    """Whole forward pass as a single fused pallas_call."""
    B, S = x_ids.shape
    V, E = params["emb"].shape
    L, _, F = params["w1"].shape
    H, Dh, BS = num_heads, E // num_heads, B * S

    # ids are pre-flattened to (B*S, 1) so the kernel never reshapes an int
    # array across the lane dim.
    args = (x_ids.astype(jnp.int32).reshape(BS, 1), mask.astype(jnp.int32),
            params["emb"],
            params["wq"], params["bq"], params["wk"], params["bk"],
            params["wv"], params["bv"], params["wo"], params["bo"],
            params["g1"], params["be1"], params["w1"], params["b1"],
            params["w2"], params["b2"], params["g2"], params["be2"],
            params["fc_w"], params["fc_b"])

    flops = (2 * BS * V * E                                # embedding one-hot matmul
             + L * (3 * 2 * BS * E * E                     # q/k/v projections
                    + 2 * 2 * B * H * S * S * Dh           # scores + context
                    + 2 * BS * E * E                       # output projection
                    + 2 * 2 * BS * E * F)                  # FFN
             + 2 * B * E)                                  # final fc
    transcendentals = L * (B * H * S * S + 2 * BS)         # exp + rsqrt
    bytes_accessed = sum(int(a.size) * a.dtype.itemsize for a in args) + B * 4

    # Scoped-VMEM limit sized from what is actually resident (whole-array
    # VMEM in_specs + activation temporaries), with generous headroom; kept
    # well under the smallest physical budget (v7x: 64 MiB per TensorCore).
    resident_bytes = sum(int(a.size) * a.dtype.itemsize for a in args)
    vmem_limit = int(min(48 * 2**20, max(16 * 2**20, 8 * resident_bytes)))

    kernel = functools.partial(fused_forward_kernel,
                               batch=B, seq_len=S, num_heads=num_heads)
    # NOTE: gridless single invocation is optimal at these toy shapes (it is
    # launch/DMA-overhead bound).  When B*S grows, add a batch/row grid with
    # dimension_semantics=("parallel",) so both v7x TensorCores get work, plus
    # a trailing "arbitrary" layer axis with per-layer weight BlockSpecs for
    # streaming, and switch matmul operands to bf16 (f32 accumulation).
    return pl.pallas_call(
        kernel,
        out_shape=jax.ShapeDtypeStruct((B, 1), jnp.float32),
        in_specs=[_vmem_spec() for _ in args],
        out_specs=_vmem_spec(),
        compiler_params=pltpu.CompilerParams(vmem_limit_bytes=vmem_limit),
        cost_estimate=pl.CostEstimate(flops=int(flops),
                                      transcendentals=int(transcendentals),
                                      bytes_accessed=int(bytes_accessed)),
    )(*args)


# ----------------------------------------------------------------------------
# Deterministic synthetic parameters (shapes match the nn.Module, weights
# pre-transposed to (in_features, out_features), per-layer tensors stacked
# along a leading layer dim).
# ----------------------------------------------------------------------------
def init_params(key, vocab, embed_dim, num_layers, ff_dim):
    E, F, L = embed_dim, ff_dim, num_layers
    keys = jax.random.split(key, 2 + L)

    emb = jax.random.normal(keys[0], (vocab, E), jnp.float32) * 0.1
    emb = emb.at[0].set(0.0)                               # padding_idx=0 -> zero row

    def rnd(k, shape, scl):
        return jax.random.normal(k, shape, jnp.float32) * scl

    names = ("wq", "bq", "wk", "bk", "wv", "bv", "wo", "bo",
             "g1", "be1", "w1", "b1", "w2", "b2", "g2", "be2")
    per = {n: [] for n in names}
    s_e, s_f = 1.0 / math.sqrt(E), 1.0 / math.sqrt(F)
    for l in range(L):
        k = jax.random.split(keys[1 + l], 12)
        per["wq"].append(rnd(k[0], (E, E), s_e));  per["bq"].append(rnd(k[1], (1, E), 0.01))
        per["wk"].append(rnd(k[2], (E, E), s_e));  per["bk"].append(rnd(k[3], (1, E), 0.01))
        per["wv"].append(rnd(k[4], (E, E), s_e));  per["bv"].append(rnd(k[5], (1, E), 0.01))
        per["wo"].append(rnd(k[6], (E, E), s_e));  per["bo"].append(rnd(k[7], (1, E), 0.01))
        per["w1"].append(rnd(k[8], (E, F), s_e));  per["b1"].append(rnd(k[9], (1, F), 0.01))
        per["w2"].append(rnd(k[10], (F, E), s_f)); per["b2"].append(rnd(k[11], (1, E), 0.01))
        per["g1"].append(jnp.ones((1, E), jnp.float32))
        per["be1"].append(jnp.zeros((1, E), jnp.float32))
        per["g2"].append(jnp.ones((1, E), jnp.float32))
        per["be2"].append(jnp.zeros((1, E), jnp.float32))

    params = {n: jnp.stack(v) for n, v in per.items()}
    params["emb"] = emb
    params["fc_w"] = rnd(keys[-1], (1, E), 1.0 / math.sqrt(E))   # fc weight as a row
    params["fc_b"] = jnp.zeros((1, 1), jnp.float32)
    return params


# ----------------------------------------------------------------------------
if __name__ == "__main__":
    # Module config (dropout=0.0 -> identity, matching inference semantics)
    INPUT_DIM = 16      # vocab size
    EMBED_DIM = 32
    NUM_HEADS = 4
    NUM_LAYERS = 2
    FF_DIM = 64

    B, S = 2, 8

    root = jax.random.PRNGKey(0)
    k_param, k_ids = jax.random.split(root)

    params = init_params(k_param, INPUT_DIM, EMBED_DIM, NUM_LAYERS, FF_DIM)

    # Token ids in [1, INPUT_DIM); explicit padding (id 0, mask 0).
    x_ids = jax.random.randint(k_ids, (B, S), 1, INPUT_DIM, dtype=jnp.int32)
    x_ids = x_ids.at[0, 6:].set(0)
    x_ids = x_ids.at[1, 5:].set(0)
    mask = (x_ids != 0).astype(jnp.int32)     # 1 = valid token, 0 = padding

    out = global_rope_transformer_forward(x_ids, mask, params, NUM_HEADS)
    out = jax.block_until_ready(out)

    assert out.shape == (B, 1), out.shape
    assert bool(jnp.all(jnp.isfinite(out)))
    print("KERNEL_OK")
</pallas_src>

<mosaic_0001>
module attributes {stable_mosaic.version = 11 : i64} {
  func.func @fused_forward_kernel(%arg0: memref<16x1xi32, #tpu.memory_space<vmem>>, %arg1: memref<2x8xi32, #tpu.memory_space<vmem>>, %arg2: memref<16x32xf32, #tpu.memory_space<vmem>>, %arg3: memref<2x32x32xf32, #tpu.memory_space<vmem>>, %arg4: memref<2x1x32xf32, #tpu.memory_space<vmem>>, %arg5: memref<2x32x32xf32, #tpu.memory_space<vmem>>, %arg6: memref<2x1x32xf32, #tpu.memory_space<vmem>>, %arg7: memref<2x32x32xf32, #tpu.memory_space<vmem>>, %arg8: memref<2x1x32xf32, #tpu.memory_space<vmem>>, %arg9: memref<2x32x32xf32, #tpu.memory_space<vmem>>, %arg10: memref<2x1x32xf32, #tpu.memory_space<vmem>>, %arg11: memref<2x1x32xf32, #tpu.memory_space<vmem>>, %arg12: memref<2x1x32xf32, #tpu.memory_space<vmem>>, %arg13: memref<2x32x64xf32, #tpu.memory_space<vmem>>, %arg14: memref<2x1x64xf32, #tpu.memory_space<vmem>>, %arg15: memref<2x64x32xf32, #tpu.memory_space<vmem>>, %arg16: memref<2x1x32xf32, #tpu.memory_space<vmem>>, %arg17: memref<2x1x32xf32, #tpu.memory_space<vmem>>, %arg18: memref<2x1x32xf32, #tpu.memory_space<vmem>>, %arg19: memref<1x32xf32, #tpu.memory_space<vmem>>, %arg20: memref<1x1xf32, #tpu.memory_space<vmem>>, %arg21: memref<2x1xf32, #tpu.memory_space<vmem>>) attributes {dimension_semantics = [], scalar_prefetch = 0 : i64, scratch_operands = 0 : i64, tpu.core_type = #tpu.core_type<tc>} {
    %c0 = arith.constant 0 : index
    %c0_0 = arith.constant 0 : index
    %0 = vector.load %arg0[%c0, %c0_0] : memref<16x1xi32, #tpu.memory_space<vmem>>, vector<16x1xi32>
    %1 = tpu.iota {dimensions = array<i32: 1>} : vector<16x16xi32>
    %2 = vector.broadcast %0 : vector<16x1xi32> to vector<16x16xi32>
    %3 = arith.cmpi eq, %1, %2 : vector<16x16xi32>
    %4 = arith.extui %3 : vector<16x16xi1> to vector<16x16xi32>
    %5 = arith.sitofp %4 : vector<16x16xi32> to vector<16x16xf32>
    %c0_1 = arith.constant 0 : index
    %c0_2 = arith.constant 0 : index
    %6 = vector.load %arg2[%c0_1, %c0_2] : memref<16x32xf32, #tpu.memory_space<vmem>>, vector<16x32xf32>
    %cst = arith.constant dense<0.000000e+00> : vector<16x32xf32>
    %7 = tpu.matmul %5, %6, %cst {dimension_numbers = #tpu.dot_dimension_numbers<[1], [0], [0], [1], [0, 0, 1, 1], [], []>} : vector<16x16xf32>, vector<16x32xf32>, vector<16x32xf32> -> vector<16x32xf32>
    %c0_3 = arith.constant 0 : index
    %c0_4 = arith.constant 0 : index
    %8 = vector.load %arg1[%c0_3, %c0_4] : memref<2x8xi32, #tpu.memory_space<vmem>>, vector<2x8xi32>
    %c0_i32 = arith.constant 0 : i32
    %9 = vector.broadcast %c0_i32 : i32 to vector<2x8xi32>
    %10 = arith.cmpi eq, %8, %9 : vector<2x8xi32>
    %cst_5 = arith.constant -1.000000e+30 : f32
    %cst_6 = arith.constant 0.000000e+00 : f32
    %11 = vector.broadcast %cst_5 : f32 to vector<2x8xf32>
    %12 = vector.broadcast %cst_6 : f32 to vector<2x8xf32>
    %13 = arith.select %10, %11, %12 : vector<2x8xi1>, vector<2x8xf32>
    %14 = vector.shape_cast %13 : vector<2x8xf32> to vector<2x1x8xf32>
    %15 = tpu.concatenate %14, %14, %14, %14 in 0 : vector<2x1x8xf32>, vector<2x1x8xf32>, vector<2x1x8xf32>, vector<2x1x8xf32> -> vector<8x1x8xf32>
    %c0_7 = arith.constant 0 : index
    %c0_8 = arith.constant 0 : index
    %c0_9 = arith.constant 0 : index
    %16 = vector.load %arg3[%c0_7, %c0_8, %c0_9] : memref<2x32x32xf32, #tpu.memory_space<vmem>>, vector<1x32x32xf32>
    %17 = vector.shape_cast %16 : vector<1x32x32xf32> to vector<32x32xf32>
    %cst_10 = arith.constant dense<0.000000e+00> : vector<16x32xf32>
    %18 = tpu.matmul %7, %17, %cst_10 {dimension_numbers = #tpu.dot_dimension_numbers<[1], [0], [0], [1], [0, 0, 1, 1], [], []>} : vector<16x32xf32>, vector<32x32xf32>, vector<16x32xf32> -> vector<16x32xf32>
    %c0_11 = arith.constant 0 : index
    %c0_12 = arith.constant 0 : index
    %c0_13 = arith.constant 0 : index
    %19 = vector.load %arg4[%c0_11, %c0_12, %c0_13] : memref<2x1x32xf32, #tpu.memory_space<vmem>>, vector<1x1x32xf32>
    %20 = vector.shape_cast %19 : vector<1x1x32xf32> to vector<1x32xf32>
    %21 = vector.broadcast %20 : vector<1x32xf32> to vector<16x32xf32>
    %22 = arith.addf %18, %21 : vector<16x32xf32>
    %cst_14 = arith.constant 0.353553385 : f32
    %23 = vector.broadcast %cst_14 : f32 to vector<16x32xf32>
    %24 = arith.mulf %22, %23 : vector<16x32xf32>
    %c0_15 = arith.constant 0 : index
    %c0_16 = arith.constant 0 : index
    %c0_17 = arith.constant 0 : index
    %25 = vector.load %arg5[%c0_15, %c0_16, %c0_17] : memref<2x32x32xf32, #tpu.memory_space<vmem>>, vector<1x32x32xf32>
    %26 = vector.shape_cast %25 : vector<1x32x32xf32> to vector<32x32xf32>
    %cst_18 = arith.constant dense<0.000000e+00> : vector<16x32xf32>
    %27 = tpu.matmul %7, %26, %cst_18 {dimension_numbers = #tpu.dot_dimension_numbers<[1], [0], [0], [1], [0, 0, 1, 1], [], []>} : vector<16x32xf32>, vector<32x32xf32>, vector<16x32xf32> -> vector<16x32xf32>
    %c0_19 = arith.constant 0 : index
    %c0_20 = arith.constant 0 : index
    %c0_21 = arith.constant 0 : index
    %28 = vector.load %arg6[%c0_19, %c0_20, %c0_21] : memref<2x1x32xf32, #tpu.memory_space<vmem>>, vector<1x1x32xf32>
    %29 = vector.shape_cast %28 : vector<1x1x32xf32> to vector<1x32xf32>
    %30 = vector.broadcast %29 : vector<1x32xf32> to vector<16x32xf32>
    %31 = arith.addf %27, %30 : vector<16x32xf32>
    %c0_22 = arith.constant 0 : index
    %c0_23 = arith.constant 0 : index
    %c0_24 = arith.constant 0 : index
    %32 = vector.load %arg7[%c0_22, %c0_23, %c0_24] : memref<2x32x32xf32, #tpu.memory_space<vmem>>, vector<1x32x32xf32>
    %33 = vector.shape_cast %32 : vector<1x32x32xf32> to vector<32x32xf32>
    %cst_25 = arith.constant dense<0.000000e+00> : vector<16x32xf32>
    %34 = tpu.matmul %7, %33, %cst_25 {dimension_numbers = #tpu.dot_dimension_numbers<[1], [0], [0], [1], [0, 0, 1, 1], [], []>} : vector<16x32xf32>, vector<32x32xf32>, vector<16x32xf32> -> vector<16x32xf32>
    %c0_26 = arith.constant 0 : index
    %c0_27 = arith.constant 0 : index
    %c0_28 = arith.constant 0 : index
    %35 = vector.load %arg8[%c0_26, %c0_27, %c0_28] : memref<2x1x32xf32, #tpu.memory_space<vmem>>, vector<1x1x32xf32>
    %36 = vector.shape_cast %35 : vector<1x1x32xf32> to vector<1x32xf32>
    %37 = vector.broadcast %36 : vector<1x32xf32> to vector<16x32xf32>
    %38 = arith.addf %34, %37 : vector<16x32xf32>
    %39 = vector.extract_strided_slice %24 {offsets = [0, 0], sizes = [16, 8], strides = [1, 1]} : vector<16x32xf32> to vector<16x8xf32>
    %40 = vector.shape_cast %39 : vector<16x8xf32> to vector<2x8x8xf32>
    %41 = vector.extract_strided_slice %24 {offsets = [0, 8], sizes = [16, 8], strides = [1, 1]} : vector<16x32xf32> to vector<16x8xf32>
    %42 = vector.shape_cast %41 : vector<16x8xf32> to vector<2x8x8xf32>
    %43 = vector.extract_strided_slice %24 {offsets = [0, 16], sizes = [16, 8], strides = [1, 1]} : vector<16x32xf32> to vector<16x8xf32>
    %44 = vector.shape_cast %43 : vector<16x8xf32> to vector<2x8x8xf32>
    %45 = vector.extract_strided_slice %24 {offsets = [0, 24], sizes = [16, 8], strides = [1, 1]} : vector<16x32xf32> to vector<16x8xf32>
    %46 = vector.shape_cast %45 : vector<16x8xf32> to vector<2x8x8xf32>
    %47 = tpu.concatenate %40, %42, %44, %46 in 0 : vector<2x8x8xf32>, vector<2x8x8xf32>, vector<2x8x8xf32>, vector<2x8x8xf32> -> vector<8x8x8xf32>
    %48 = vector.extract_strided_slice %31 {offsets = [0, 0], sizes = [16, 8], strides = [1, 1]} : vector<16x32xf32> to vector<16x8xf32>
    %49 = vector.shape_cast %48 : vector<16x8xf32> to vector<2x8x8xf32>
    %50 = vector.extract_strided_slice %31 {offsets = [0, 8], sizes = [16, 8], strides = [1, 1]} : vector<16x32xf32> to vector<16x8xf32>
    %51 = vector.shape_cast %50 : vector<16x8xf32> to vector<2x8x8xf32>
    %52 = vector.extract_strided_slice %31 {offsets = [0, 16], sizes = [16, 8], strides = [1, 1]} : vector<16x32xf32> to vector<16x8xf32>
    %53 = vector.shape_cast %52 : vector<16x8xf32> to vector<2x8x8xf32>
    %54 = vector.extract_strided_slice %31 {offsets = [0, 24], sizes = [16, 8], strides = [1, 1]} : vector<16x32xf32> to vector<16x8xf32>
    %55 = vector.shape_cast %54 : vector<16x8xf32> to vector<2x8x8xf32>
    %56 = tpu.concatenate %49, %51, %53, %55 in 0 : vector<2x8x8xf32>, vector<2x8x8xf32>, vector<2x8x8xf32>, vector<2x8x8xf32> -> vector<8x8x8xf32>
    %57 = vector.extract_strided_slice %38 {offsets = [0, 0], sizes = [16, 8], strides = [1, 1]} : vector<16x32xf32> to vector<16x8xf32>
    %58 = vector.shape_cast %57 : vector<16x8xf32> to vector<2x8x8xf32>
    %59 = vector.extract_strided_slice %38 {offsets = [0, 8], sizes = [16, 8], strides = [1, 1]} : vector<16x32xf32> to vector<16x8xf32>
    %60 = vector.shape_cast %59 : vector<16x8xf32> to vector<2x8x8xf32>
    %61 = vector.extract_strided_slice %38 {offsets = [0, 16], sizes = [16, 8], strides = [1, 1]} : vector<16x32xf32> to vector<16x8xf32>
    %62 = vector.shape_cast %61 : vector<16x8xf32> to vector<2x8x8xf32>
    %63 = vector.extract_strided_slice %38 {offsets = [0, 24], sizes = [16, 8], strides = [1, 1]} : vector<16x32xf32> to vector<16x8xf32>
    %64 = vector.shape_cast %63 : vector<16x8xf32> to vector<2x8x8xf32>
    %65 = tpu.concatenate %58, %60, %62, %64 in 0 : vector<2x8x8xf32>, vector<2x8x8xf32>, vector<2x8x8xf32>, vector<2x8x8xf32> -> vector<8x8x8xf32>
    "tpu.trace_start"() <{level = 10 : i32, message = "bqd,bkd->bqk"}> : () -> ()
    %cst_29 = arith.constant dense<0.000000e+00> : vector<8x8x8xf32>
    %66 = tpu.matmul %47, %56, %cst_29 {dimension_numbers = #tpu.dot_dimension_numbers<[2], [2], [1], [1], [0, 0, 0, 1, 1, 1], [0], [0]>} : vector<8x8x8xf32>, vector<8x8x8xf32>, vector<8x8x8xf32> -> vector<8x8x8xf32>
    "tpu.trace_stop"() : () -> ()
    %67 = vector.broadcast %15 : vector<8x1x8xf32> to vector<8x8x8xf32>
    %68 = arith.addf %66, %67 : vector<8x8x8xf32>
    %cst_30 = arith.constant dense<0xFF800000> : vector<8x8xf32>
    %69 = vector.multi_reduction <maximumf>, %68, %cst_30 [2] : vector<8x8x8xf32> to vector<8x8xf32>
    %70 = vector.shape_cast %69 : vector<8x8xf32> to vector<8x8x1xf32>
    %71 = vector.broadcast %70 : vector<8x8x1xf32> to vector<8x8x8xf32>
    %72 = arith.subf %68, %71 : vector<8x8x8xf32>
    %73 = math.exp %72 : vector<8x8x8xf32>
    %cst_31 = arith.constant dense<0.000000e+00> : vector<8x8xf32>
    %74 = vector.multi_reduction <add>, %73, %cst_31 [2] : vector<8x8x8xf32> to vector<8x8xf32>
    %75 = vector.shape_cast %74 : vector<8x8xf32> to vector<8x8x1xf32>
    %76 = vector.broadcast %75 : vector<8x8x1xf32> to vector<8x8x8xf32>
    %77 = arith.divf %73, %76 : vector<8x8x8xf32>
    "tpu.trace_start"() <{level = 10 : i32, message = "bqk,bkd->bqd"}> : () -> ()
    %cst_32 = arith.constant dense<0.000000e+00> : vector<8x8x8xf32>
    %78 = tpu.matmul %77, %65, %cst_32 {dimension_numbers = #tpu.dot_dimension_numbers<[2], [1], [1], [2], [0, 0, 0, 1, 1, 2], [0], [0]>} : vector<8x8x8xf32>, vector<8x8x8xf32>, vector<8x8x8xf32> -> vector<8x8x8xf32>
    "tpu.trace_stop"() : () -> ()
    %79 = vector.extract_strided_slice %78 {offsets = [0, 0, 0], sizes = [2, 8, 8], strides = [1, 1, 1]} : vector<8x8x8xf32> to vector<2x8x8xf32>
    %80 = vector.shape_cast %79 : vector<2x8x8xf32> to vector<16x8xf32>
    %81 = vector.extract_strided_slice %78 {offsets = [2, 0, 0], sizes = [2, 8, 8], strides = [1, 1, 1]} : vector<8x8x8xf32> to vector<2x8x8xf32>
    %82 = vector.shape_cast %81 : vector<2x8x8xf32> to vector<16x8xf32>
    %83 = vector.extract_strided_slice %78 {offsets = [4, 0, 0], sizes = [2, 8, 8], strides = [1, 1, 1]} : vector<8x8x8xf32> to vector<2x8x8xf32>
    %84 = vector.shape_cast %83 : vector<2x8x8xf32> to vector<16x8xf32>
    %85 = vector.extract_strided_slice %78 {offsets = [6, 0, 0], sizes = [2, 8, 8], strides = [1, 1, 1]} : vector<8x8x8xf32> to vector<2x8x8xf32>
    %86 = vector.shape_cast %85 : vector<2x8x8xf32> to vector<16x8xf32>
    %87 = tpu.concatenate %80, %82, %84, %86 in 1 : vector<16x8xf32>, vector<16x8xf32>, vector<16x8xf32>, vector<16x8xf32> -> vector<16x32xf32>
    %c0_33 = arith.constant 0 : index
    %c0_34 = arith.constant 0 : index
    %c0_35 = arith.constant 0 : index
    %88 = vector.load %arg9[%c0_33, %c0_34, %c0_35] : memref<2x32x32xf32, #tpu.memory_space<vmem>>, vector<1x32x32xf32>
    %89 = vector.shape_cast %88 : vector<1x32x32xf32> to vector<32x32xf32>
    %cst_36 = arith.constant dense<0.000000e+00> : vector<16x32xf32>
    %90 = tpu.matmul %87, %89, %cst_36 {dimension_numbers = #tpu.dot_dimension_numbers<[1], [0], [0], [1], [0, 0, 1, 1], [], []>} : vector<16x32xf32>, vector<32x32xf32>, vector<16x32xf32> -> vector<16x32xf32>
    %c0_37 = arith.constant 0 : index
    %c0_38 = arith.constant 0 : index
    %c0_39 = arith.constant 0 : index
    %91 = vector.load %arg10[%c0_37, %c0_38, %c0_39] : memref<2x1x32xf32, #tpu.memory_space<vmem>>, vector<1x1x32xf32>
    %92 = vector.shape_cast %91 : vector<1x1x32xf32> to vector<1x32xf32>
    %93 = vector.broadcast %92 : vector<1x32xf32> to vector<16x32xf32>
    %94 = arith.addf %90, %93 : vector<16x32xf32>
    %95 = arith.addf %7, %94 : vector<16x32xf32>
    %c0_40 = arith.constant 0 : index
    %c0_41 = arith.constant 0 : index
    %c0_42 = arith.constant 0 : index
    %96 = vector.load %arg11[%c0_40, %c0_41, %c0_42] : memref<2x1x32xf32, #tpu.memory_space<vmem>>, vector<1x1x32xf32>
    %97 = vector.shape_cast %96 : vector<1x1x32xf32> to vector<1x32xf32>
    %c0_43 = arith.constant 0 : index
    %c0_44 = arith.constant 0 : index
    %c0_45 = arith.constant 0 : index
    %98 = vector.load %arg12[%c0_43, %c0_44, %c0_45] : memref<2x1x32xf32, #tpu.memory_space<vmem>>, vector<1x1x32xf32>
    %99 = vector.shape_cast %98 : vector<1x1x32xf32> to vector<1x32xf32>
    %cst_46 = arith.constant dense<0.000000e+00> : vector<16xf32>
    %100 = vector.multi_reduction <add>, %95, %cst_46 [1] : vector<16x32xf32> to vector<16xf32>
    %101 = vector.shape_cast %100 : vector<16xf32> to vector<16x1xf32>
    %cst_47 = arith.constant 3.200000e+01 : f32
    %102 = vector.broadcast %cst_47 : f32 to vector<16x1xf32>
    %103 = arith.divf %101, %102 : vector<16x1xf32>
    %104 = vector.broadcast %103 : vector<16x1xf32> to vector<16x32xf32>
    %105 = arith.subf %95, %104 : vector<16x32xf32>
    %106 = arith.mulf %105, %105 : vector<16x32xf32>
    %cst_48 = arith.constant dense<0.000000e+00> : vector<16xf32>
    %107 = vector.multi_reduction <add>, %106, %cst_48 [1] : vector<16x32xf32> to vector<16xf32>
    %108 = vector.shape_cast %107 : vector<16xf32> to vector<16x1xf32>
    %cst_49 = arith.constant 3.200000e+01 : f32
    %109 = vector.broadcast %cst_49 : f32 to vector<16x1xf32>
    %110 = arith.divf %108, %109 : vector<16x1xf32>
    %cst_50 = arith.constant 9.99999974E-6 : f32
    %111 = vector.broadcast %cst_50 : f32 to vector<16x1xf32>
    %112 = arith.addf %110, %111 : vector<16x1xf32>
    %113 = math.rsqrt %112 : vector<16x1xf32>
    %114 = vector.broadcast %113 : vector<16x1xf32> to vector<16x32xf32>
    %115 = arith.mulf %105, %114 : vector<16x32xf32>
    %116 = vector.broadcast %97 : vector<1x32xf32> to vector<16x32xf32>
    %117 = arith.mulf %115, %116 : vector<16x32xf32>
    %118 = vector.broadcast %99 : vector<1x32xf32> to vector<16x32xf32>
    %119 = arith.addf %117, %118 : vector<16x32xf32>
    %c0_51 = arith.constant 0 : index
    %c0_52 = arith.constant 0 : index
    %c0_53 = arith.constant 0 : index
    %120 = vector.load %arg13[%c0_51, %c0_52, %c0_53] : memref<2x32x64xf32, #tpu.memory_space<vmem>>, vector<1x32x64xf32>
    %121 = vector.shape_cast %120 : vector<1x32x64xf32> to vector<32x64xf32>
    %cst_54 = arith.constant dense<0.000000e+00> : vector<16x64xf32>
    %122 = tpu.matmul %119, %121, %cst_54 {dimension_numbers = #tpu.dot_dimension_numbers<[1], [0], [0], [1], [0, 0, 1, 1], [], []>} : vector<16x32xf32>, vector<32x64xf32>, vector<16x64xf32> -> vector<16x64xf32>
    %c0_55 = arith.constant 0 : index
    %c0_56 = arith.constant 0 : index
    %c0_57 = arith.constant 0 : index
    %123 = vector.load %arg14[%c0_55, %c0_56, %c0_57] : memref<2x1x64xf32, #tpu.memory_space<vmem>>, vector<1x1x64xf32>
    %124 = vector.shape_cast %123 : vector<1x1x64xf32> to vector<1x64xf32>
    %125 = vector.broadcast %124 : vector<1x64xf32> to vector<16x64xf32>
    %126 = arith.addf %122, %125 : vector<16x64xf32>
    %cst_58 = arith.constant 0.000000e+00 : f32
    %127 = vector.broadcast %cst_58 : f32 to vector<16x64xf32>
    %128 = arith.maximumf %126, %127 : vector<16x64xf32>
    %c0_59 = arith.constant 0 : index
    %c0_60 = arith.constant 0 : index
    %c0_61 = arith.constant 0 : index
    %129 = vector.load %arg15[%c0_59, %c0_60, %c0_61] : memref<2x64x32xf32, #tpu.memory_space<vmem>>, vector<1x64x32xf32>
    %130 = vector.shape_cast %129 : vector<1x64x32xf32> to vector<64x32xf32>
    %cst_62 = arith.constant dense<0.000000e+00> : vector<16x32xf32>
    %131 = tpu.matmul %128, %130, %cst_62 {dimension_numbers = #tpu.dot_dimension_numbers<[1], [0], [0], [1], [0, 0, 1, 1], [], []>} : vector<16x64xf32>, vector<64x32xf32>, vector<16x32xf32> -> vector<16x32xf32>
    %c0_63 = arith.constant 0 : index
    %c0_64 = arith.constant 0 : index
    %c0_65 = arith.constant 0 : index
    %132 = vector.load %arg16[%c0_63, %c0_64, %c0_65] : memref<2x1x32xf32, #tpu.memory_space<vmem>>, vector<1x1x32xf32>
    %133 = vector.shape_cast %132 : vector<1x1x32xf32> to vector<1x32xf32>
    %134 = vector.broadcast %133 : vector<1x32xf32> to vector<16x32xf32>
    %135 = arith.addf %131, %134 : vector<16x32xf32>
    %136 = arith.addf %119, %135 : vector<16x32xf32>
    %c0_66 = arith.constant 0 : index
    %c0_67 = arith.constant 0 : index
    %c0_68 = arith.constant 0 : index
    %137 = vector.load %arg17[%c0_66, %c0_67, %c0_68] : memref<2x1x32xf32, #tpu.memory_space<vmem>>, vector<1x1x32xf32>
    %138 = vector.shape_cast %137 : vector<1x1x32xf32> to vector<1x32xf32>
    %c0_69 = arith.constant 0 : index
    %c0_70 = arith.constant 0 : index
    %c0_71 = arith.constant 0 : index
    %139 = vector.load %arg18[%c0_69, %c0_70, %c0_71] : memref<2x1x32xf32, #tpu.memory_space<vmem>>, vector<1x1x32xf32>
    %140 = vector.shape_cast %139 : vector<1x1x32xf32> to vector<1x32xf32>
    %cst_72 = arith.constant dense<0.000000e+00> : vector<16xf32>
    %141 = vector.multi_reduction <add>, %136, %cst_72 [1] : vector<16x32xf32> to vector<16xf32>
    %142 = vector.shape_cast %141 : vector<16xf32> to vector<16x1xf32>
    %cst_73 = arith.constant 3.200000e+01 : f32
    %143 = vector.broadcast %cst_73 : f32 to vector<16x1xf32>
    %144 = arith.divf %142, %143 : vector<16x1xf32>
    %145 = vector.broadcast %144 : vector<16x1xf32> to vector<16x32xf32>
    %146 = arith.subf %136, %145 : vector<16x32xf32>
    %147 = arith.mulf %146, %146 : vector<16x32xf32>
    %cst_74 = arith.constant dense<0.000000e+00> : vector<16xf32>
    %148 = vector.multi_reduction <add>, %147, %cst_74 [1] : vector<16x32xf32> to vector<16xf32>
    %149 = vector.shape_cast %148 : vector<16xf32> to vector<16x1xf32>
    %cst_75 = arith.constant 3.200000e+01 : f32
    %150 = vector.broadcast %cst_75 : f32 to vector<16x1xf32>
    %151 = arith.divf %149, %150 : vector<16x1xf32>
    %cst_76 = arith.constant 9.99999974E-6 : f32
    %152 = vector.broadcast %cst_76 : f32 to vector<16x1xf32>
    %153 = arith.addf %151, %152 : vector<16x1xf32>
    %154 = math.rsqrt %153 : vector<16x1xf32>
    %155 = vector.broadcast %154 : vector<16x1xf32> to vector<16x32xf32>
    %156 = arith.mulf %146, %155 : vector<16x32xf32>
    %157 = vector.broadcast %138 : vector<1x32xf32> to vector<16x32xf32>
    %158 = arith.mulf %156, %157 : vector<16x32xf32>
    %159 = vector.broadcast %140 : vector<1x32xf32> to vector<16x32xf32>
    %160 = arith.addf %158, %159 : vector<16x32xf32>
    %c1 = arith.constant 1 : index
    %c0_77 = arith.constant 0 : index
    %c0_78 = arith.constant 0 : index
    %161 = vector.load %arg3[%c1, %c0_77, %c0_78] : memref<2x32x32xf32, #tpu.memory_space<vmem>>, vector<1x32x32xf32>
    %162 = vector.shape_cast %161 : vector<1x32x32xf32> to vector<32x32xf32>
    %cst_79 = arith.constant dense<0.000000e+00> : vector<16x32xf32>
    %163 = tpu.matmul %160, %162, %cst_79 {dimension_numbers = #tpu.dot_dimension_numbers<[1], [0], [0], [1], [0, 0, 1, 1], [], []>} : vector<16x32xf32>, vector<32x32xf32>, vector<16x32xf32> -> vector<16x32xf32>
    %c1_80 = arith.constant 1 : index
    %c0_81 = arith.constant 0 : index
    %c0_82 = arith.constant 0 : index
    %164 = vector.load %arg4[%c1_80, %c0_81, %c0_82] : memref<2x1x32xf32, #tpu.memory_space<vmem>>, vector<1x1x32xf32>
    %165 = vector.shape_cast %164 : vector<1x1x32xf32> to vector<1x32xf32>
    %166 = vector.broadcast %165 : vector<1x32xf32> to vector<16x32xf32>
    %167 = arith.addf %163, %166 : vector<16x32xf32>
    %cst_83 = arith.constant 0.353553385 : f32
    %168 = vector.broadcast %cst_83 : f32 to vector<16x32xf32>
    %169 = arith.mulf %167, %168 : vector<16x32xf32>
    %c1_84 = arith.constant 1 : index
    %c0_85 = arith.constant 0 : index
    %c0_86 = arith.constant 0 : index
    %170 = vector.load %arg5[%c1_84, %c0_85, %c0_86] : memref<2x32x32xf32, #tpu.memory_space<vmem>>, vector<1x32x32xf32>
    %171 = vector.shape_cast %170 : vector<1x32x32xf32> to vector<32x32xf32>
    %cst_87 = arith.constant dense<0.000000e+00> : vector<16x32xf32>
    %172 = tpu.matmul %160, %171, %cst_87 {dimension_numbers = #tpu.dot_dimension_numbers<[1], [0], [0], [1], [0, 0, 1, 1], [], []>} : vector<16x32xf32>, vector<32x32xf32>, vector<16x32xf32> -> vector<16x32xf32>
    %c1_88 = arith.constant 1 : index
    %c0_89 = arith.constant 0 : index
    %c0_90 = arith.constant 0 : index
    %173 = vector.load %arg6[%c1_88, %c0_89, %c0_90] : memref<2x1x32xf32, #tpu.memory_space<vmem>>, vector<1x1x32xf32>
    %174 = vector.shape_cast %173 : vector<1x1x32xf32> to vector<1x32xf32>
    %175 = vector.broadcast %174 : vector<1x32xf32> to vector<16x32xf32>
    %176 = arith.addf %172, %175 : vector<16x32xf32>
    %c1_91 = arith.constant 1 : index
    %c0_92 = arith.constant 0 : index
    %c0_93 = arith.constant 0 : index
    %177 = vector.load %arg7[%c1_91, %c0_92, %c0_93] : memref<2x32x32xf32, #tpu.memory_space<vmem>>, vector<1x32x32xf32>
    %178 = vector.shape_cast %177 : vector<1x32x32xf32> to vector<32x32xf32>
    %cst_94 = arith.constant dense<0.000000e+00> : vector<16x32xf32>
    %179 = tpu.matmul %160, %178, %cst_94 {dimension_numbers = #tpu.dot_dimension_numbers<[1], [0], [0], [1], [0, 0, 1, 1], [], []>} : vector<16x32xf32>, vector<32x32xf32>, vector<16x32xf32> -> vector<16x32xf32>
    %c1_95 = arith.constant 1 : index
    %c0_96 = arith.constant 0 : index
    %c0_97 = arith.constant 0 : index
    %180 = vector.load %arg8[%c1_95, %c0_96, %c0_97] : memref<2x1x32xf32, #tpu.memory_space<vmem>>, vector<1x1x32xf32>
    %181 = vector.shape_cast %180 : vector<1x1x32xf32> to vector<1x32xf32>
    %182 = vector.broadcast %181 : vector<1x32xf32> to vector<16x32xf32>
    %183 = arith.addf %179, %182 : vector<16x32xf32>
    %184 = vector.extract_strided_slice %169 {offsets = [0, 0], sizes = [16, 8], strides = [1, 1]} : vector<16x32xf32> to vector<16x8xf32>
    %185 = vector.shape_cast %184 : vector<16x8xf32> to vector<2x8x8xf32>
    %186 = vector.extract_strided_slice %169 {offsets = [0, 8], sizes = [16, 8], strides = [1, 1]} : vector<16x32xf32> to vector<16x8xf32>
    %187 = vector.shape_cast %186 : vector<16x8xf32> to vector<2x8x8xf32>
    %188 = vector.extract_strided_slice %169 {offsets = [0, 16], sizes = [16, 8], strides = [1, 1]} : vector<16x32xf32> to vector<16x8xf32>
    %189 = vector.shape_cast %188 : vector<16x8xf32> to vector<2x8x8xf32>
    %190 = vector.extract_strided_slice %169 {offsets = [0, 24], sizes = [16, 8], strides = [1, 1]} : vector<16x32xf32> to vector<16x8xf32>
    %191 = vector.shape_cast %190 : vector<16x8xf32> to vector<2x8x8xf32>
    %192 = tpu.concatenate %185, %187, %189, %191 in 0 : vector<2x8x8xf32>, vector<2x8x8xf32>, vector<2x8x8xf32>, vector<2x8x8xf32> -> vector<8x8x8xf32>
    %193 = vector.extract_strided_slice %176 {offsets = [0, 0], sizes = [16, 8], strides = [1, 1]} : vector<16x32xf32> to vector<16x8xf32>
    %194 = vector.shape_cast %193 : vector<16x8xf32> to vector<2x8x8xf32>
    %195 = vector.extract_strided_slice %176 {offsets = [0, 8], sizes = [16, 8], strides = [1, 1]} : vector<16x32xf32> to vector<16x8xf32>
    %196 = vector.shape_cast %195 : vector<16x8xf32> to vector<2x8x8xf32>
    %197 = vector.extract_strided_slice %176 {offsets = [0, 16], sizes = [16, 8], strides = [1, 1]} : vector<16x32xf32> to vector<16x8xf32>
    %198 = vector.shape_cast %197 : vector<16x8xf32> to vector<2x8x8xf32>
    %199 = vector.extract_strided_slice %176 {offsets = [0, 24], sizes = [16, 8], strides = [1, 1]} : vector<16x32xf32> to vector<16x8xf32>
    %200 = vector.shape_cast %199 : vector<16x8xf32> to vector<2x8x8xf32>
    %201 = tpu.concatenate %194, %196, %198, %200 in 0 : vector<2x8x8xf32>, vector<2x8x8xf32>, vector<2x8x8xf32>, vector<2x8x8xf32> -> vector<8x8x8xf32>
    %202 = vector.extract_strided_slice %183 {offsets = [0, 0], sizes = [16, 8], strides = [1, 1]} : vector<16x32xf32> to vector<16x8xf32>
    %203 = vector.shape_cast %202 : vector<16x8xf32> to vector<2x8x8xf32>
    %204 = vector.extract_strided_slice %183 {offsets = [0, 8], sizes = [16, 8], strides = [1, 1]} : vector<16x32xf32> to vector<16x8xf32>
    %205 = vector.shape_cast %204 : vector<16x8xf32> to vector<2x8x8xf32>
    %206 = vector.extract_strided_slice %183 {offsets = [0, 16], sizes = [16, 8], strides = [1, 1]} : vector<16x32xf32> to vector<16x8xf32>
    %207 = vector.shape_cast %206 : vector<16x8xf32> to vector<2x8x8xf32>
    %208 = vector.extract_strided_slice %183 {offsets = [0, 24], sizes = [16, 8], strides = [1, 1]} : vector<16x32xf32> to vector<16x8xf32>
    %209 = vector.shape_cast %208 : vector<16x8xf32> to vector<2x8x8xf32>
    %210 = tpu.concatenate %203, %205, %207, %209 in 0 : vector<2x8x8xf32>, vector<2x8x8xf32>, vector<2x8x8xf32>, vector<2x8x8xf32> -> vector<8x8x8xf32>
    "tpu.trace_start"() <{level = 10 : i32, message = "bqd,bkd->bqk"}> : () -> ()
    %cst_98 = arith.constant dense<0.000000e+00> : vector<8x8x8xf32>
    %211 = tpu.matmul %192, %201, %cst_98 {dimension_numbers = #tpu.dot_dimension_numbers<[2], [2], [1], [1], [0, 0, 0, 1, 1, 1], [0], [0]>} : vector<8x8x8xf32>, vector<8x8x8xf32>, vector<8x8x8xf32> -> vector<8x8x8xf32>
    "tpu.trace_stop"() : () -> ()
    %212 = vector.broadcast %15 : vector<8x1x8xf32> to vector<8x8x8xf32>
    %213 = arith.addf %211, %212 : vector<8x8x8xf32>
    %cst_99 = arith.constant dense<0xFF800000> : vector<8x8xf32>
    %214 = vector.multi_reduction <maximumf>, %213, %cst_99 [2] : vector<8x8x8xf32> to vector<8x8xf32>
    %215 = vector.shape_cast %214 : vector<8x8xf32> to vector<8x8x1xf32>
    %216 = vector.broadcast %215 : vector<8x8x1xf32> to vector<8x8x8xf32>
    %217 = arith.subf %213, %216 : vector<8x8x8xf32>
    %218 = math.exp %217 : vector<8x8x8xf32>
    %cst_100 = arith.constant dense<0.000000e+00> : vector<8x8xf32>
    %219 = vector.multi_reduction <add>, %218, %cst_100 [2] : vector<8x8x8xf32> to vector<8x8xf32>
    %220 = vector.shape_cast %219 : vector<8x8xf32> to vector<8x8x1xf32>
    %221 = vector.broadcast %220 : vector<8x8x1xf32> to vector<8x8x8xf32>
    %222 = arith.divf %218, %221 : vector<8x8x8xf32>
    "tpu.trace_start"() <{level = 10 : i32, message = "bqk,bkd->bqd"}> : () -> ()
    %cst_101 = arith.constant dense<0.000000e+00> : vector<8x8x8xf32>
    %223 = tpu.matmul %222, %210, %cst_101 {dimension_numbers = #tpu.dot_dimension_numbers<[2], [1], [1], [2], [0, 0, 0, 1, 1, 2], [0], [0]>} : vector<8x8x8xf32>, vector<8x8x8xf32>, vector<8x8x8xf32> -> vector<8x8x8xf32>
    "tpu.trace_stop"() : () -> ()
    %224 = vector.extract_strided_slice %223 {offsets = [0, 0, 0], sizes = [2, 8, 8], strides = [1, 1, 1]} : vector<8x8x8xf32> to vector<2x8x8xf32>
    %225 = vector.shape_cast %224 : vector<2x8x8xf32> to vector<16x8xf32>
    %226 = vector.extract_strided_slice %223 {offsets = [2, 0, 0], sizes = [2, 8, 8], strides = [1, 1, 1]} : vector<8x8x8xf32> to vector<2x8x8xf32>
    %227 = vector.shape_cast %226 : vector<2x8x8xf32> to vector<16x8xf32>
    %228 = vector.extract_strided_slice %223 {offsets = [4, 0, 0], sizes = [2, 8, 8], strides = [1, 1, 1]} : vector<8x8x8xf32> to vector<2x8x8xf32>
    %229 = vector.shape_cast %228 : vector<2x8x8xf32> to vector<16x8xf32>
    %230 = vector.extract_strided_slice %223 {offsets = [6, 0, 0], sizes = [2, 8, 8], strides = [1, 1, 1]} : vector<8x8x8xf32> to vector<2x8x8xf32>
    %231 = vector.shape_cast %230 : vector<2x8x8xf32> to vector<16x8xf32>
    %232 = tpu.concatenate %225, %227, %229, %231 in 1 : vector<16x8xf32>, vector<16x8xf32>, vector<16x8xf32>, vector<16x8xf32> -> vector<16x32xf32>
    %c1_102 = arith.constant 1 : index
    %c0_103 = arith.constant 0 : index
    %c0_104 = arith.constant 0 : index
    %233 = vector.load %arg9[%c1_102, %c0_103, %c0_104] : memref<2x32x32xf32, #tpu.memory_space<vmem>>, vector<1x32x32xf32>
    %234 = vector.shape_cast %233 : vector<1x32x32xf32> to vector<32x32xf32>
    %cst_105 = arith.constant dense<0.000000e+00> : vector<16x32xf32>
    %235 = tpu.matmul %232, %234, %cst_105 {dimension_numbers = #tpu.dot_dimension_numbers<[1], [0], [0], [1], [0, 0, 1, 1], [], []>} : vector<16x32xf32>, vector<32x32xf32>, vector<16x32xf32> -> vector<16x32xf32>
    %c1_106 = arith.constant 1 : index
    %c0_107 = arith.constant 0 : index
    %c0_108 = arith.constant 0 : index
    %236 = vector.load %arg10[%c1_106, %c0_107, %c0_108] : memref<2x1x32xf32, #tpu.memory_space<vmem>>, vector<1x1x32xf32>
    %237 = vector.shape_cast %236 : vector<1x1x32xf32> to vector<1x32xf32>
    %238 = vector.broadcast %237 : vector<1x32xf32> to vector<16x32xf32>
    %239 = arith.addf %235, %238 : vector<16x32xf32>
    %240 = arith.addf %160, %239 : vector<16x32xf32>
    %c1_109 = arith.constant 1 : index
    %c0_110 = arith.constant 0 : index
    %c0_111 = arith.constant 0 : index
    %241 = vector.load %arg11[%c1_109, %c0_110, %c0_111] : memref<2x1x32xf32, #tpu.memory_space<vmem>>, vector<1x1x32xf32>
    %242 = vector.shape_cast %241 : vector<1x1x32xf32> to vector<1x32xf32>
    %c1_112 = arith.constant 1 : index
    %c0_113 = arith.constant 0 : index
    %c0_114 = arith.constant 0 : index
    %243 = vector.load %arg12[%c1_112, %c0_113, %c0_114] : memref<2x1x32xf32, #tpu.memory_space<vmem>>, vector<1x1x32xf32>
    %244 = vector.shape_cast %243 : vector<1x1x32xf32> to vector<1x32xf32>
    %cst_115 = arith.constant dense<0.000000e+00> : vector<16xf32>
    %245 = vector.multi_reduction <add>, %240, %cst_115 [1] : vector<16x32xf32> to vector<16xf32>
    %246 = vector.shape_cast %245 : vector<16xf32> to vector<16x1xf32>
    %cst_116 = arith.constant 3.200000e+01 : f32
    %247 = vector.broadcast %cst_116 : f32 to vector<16x1xf32>
    %248 = arith.divf %246, %247 : vector<16x1xf32>
    %249 = vector.broadcast %248 : vector<16x1xf32> to vector<16x32xf32>
    %250 = arith.subf %240, %249 : vector<16x32xf32>
    %251 = arith.mulf %250, %250 : vector<16x32xf32>
    %cst_117 = arith.constant dense<0.000000e+00> : vector<16xf32>
    %252 = vector.multi_reduction <add>, %251, %cst_117 [1] : vector<16x32xf32> to vector<16xf32>
    %253 = vector.shape_cast %252 : vector<16xf32> to vector<16x1xf32>
    %cst_118 = arith.constant 3.200000e+01 : f32
    %254 = vector.broadcast %cst_118 : f32 to vector<16x1xf32>
    %255 = arith.divf %253, %254 : vector<16x1xf32>
    %cst_119 = arith.constant 9.99999974E-6 : f32
    %256 = vector.broadcast %cst_119 : f32 to vector<16x1xf32>
    %257 = arith.addf %255, %256 : vector<16x1xf32>
    %258 = math.rsqrt %257 : vector<16x1xf32>
    %259 = vector.broadcast %258 : vector<16x1xf32> to vector<16x32xf32>
    %260 = arith.mulf %250, %259 : vector<16x32xf32>
    %261 = vector.broadcast %242 : vector<1x32xf32> to vector<16x32xf32>
    %262 = arith.mulf %260, %261 : vector<16x32xf32>
    %263 = vector.broadcast %244 : vector<1x32xf32> to vector<16x32xf32>
    %264 = arith.addf %262, %263 : vector<16x32xf32>
    %c1_120 = arith.constant 1 : index
    %c0_121 = arith.constant 0 : index
    %c0_122 = arith.constant 0 : index
    %265 = vector.load %arg13[%c1_120, %c0_121, %c0_122] : memref<2x32x64xf32, #tpu.memory_space<vmem>>, vector<1x32x64xf32>
    %266 = vector.shape_cast %265 : vector<1x32x64xf32> to vector<32x64xf32>
    %cst_123 = arith.constant dense<0.000000e+00> : vector<16x64xf32>
    %267 = tpu.matmul %264, %266, %cst_123 {dimension_numbers = #tpu.dot_dimension_numbers<[1], [0], [0], [1], [0, 0, 1, 1], [], []>} : vector<16x32xf32>, vector<32x64xf32>, vector<16x64xf32> -> vector<16x64xf32>
    %c1_124 = arith.constant 1 : index
    %c0_125 = arith.constant 0 : index
    %c0_126 = arith.constant 0 : index
    %268 = vector.load %arg14[%c1_124, %c0_125, %c0_126] : memref<2x1x64xf32, #tpu.memory_space<vmem>>, vector<1x1x64xf32>
    %269 = vector.shape_cast %268 : vector<1x1x64xf32> to vector<1x64xf32>
    %270 = vector.broadcast %269 : vector<1x64xf32> to vector<16x64xf32>
    %271 = arith.addf %267, %270 : vector<16x64xf32>
    %cst_127 = arith.constant 0.000000e+00 : f32
    %272 = vector.broadcast %cst_127 : f32 to vector<16x64xf32>
    %273 = arith.maximumf %271, %272 : vector<16x64xf32>
    %c1_128 = arith.constant 1 : index
    %c0_129 = arith.constant 0 : index
    %c0_130 = arith.constant 0 : index
    %274 = vector.load %arg15[%c1_128, %c0_129, %c0_130] : memref<2x64x32xf32, #tpu.memory_space<vmem>>, vector<1x64x32xf32>
    %275 = vector.shape_cast %274 : vector<1x64x32xf32> to vector<64x32xf32>
    %cst_131 = arith.constant dense<0.000000e+00> : vector<16x32xf32>
    %276 = tpu.matmul %273, %275, %cst_131 {dimension_numbers = #tpu.dot_dimension_numbers<[1], [0], [0], [1], [0, 0, 1, 1], [], []>} : vector<16x64xf32>, vector<64x32xf32>, vector<16x32xf32> -> vector<16x32xf32>
    %c1_132 = arith.constant 1 : index
    %c0_133 = arith.constant 0 : index
    %c0_134 = arith.constant 0 : index
    %277 = vector.load %arg16[%c1_132, %c0_133, %c0_134] : memref<2x1x32xf32, #tpu.memory_space<vmem>>, vector<1x1x32xf32>
    %278 = vector.shape_cast %277 : vector<1x1x32xf32> to vector<1x32xf32>
    %279 = vector.broadcast %278 : vector<1x32xf32> to vector<16x32xf32>
    %280 = arith.addf %276, %279 : vector<16x32xf32>
    %281 = arith.addf %264, %280 : vector<16x32xf32>
    %c1_135 = arith.constant 1 : index
    %c0_136 = arith.constant 0 : index
    %c0_137 = arith.constant 0 : index
    %282 = vector.load %arg17[%c1_135, %c0_136, %c0_137] : memref<2x1x32xf32, #tpu.memory_space<vmem>>, vector<1x1x32xf32>
    %283 = vector.shape_cast %282 : vector<1x1x32xf32> to vector<1x32xf32>
    %c1_138 = arith.constant 1 : index
    %c0_139 = arith.constant 0 : index
    %c0_140 = arith.constant 0 : index
    %284 = vector.load %arg18[%c1_138, %c0_139, %c0_140] : memref<2x1x32xf32, #tpu.memory_space<vmem>>, vector<1x1x32xf32>
    %285 = vector.shape_cast %284 : vector<1x1x32xf32> to vector<1x32xf32>
    %cst_141 = arith.constant dense<0.000000e+00> : vector<16xf32>
    %286 = vector.multi_reduction <add>, %281, %cst_141 [1] : vector<16x32xf32> to vector<16xf32>
    %287 = vector.shape_cast %286 : vector<16xf32> to vector<16x1xf32>
    %cst_142 = arith.constant 3.200000e+01 : f32
    %288 = vector.broadcast %cst_142 : f32 to vector<16x1xf32>
    %289 = arith.divf %287, %288 : vector<16x1xf32>
    %290 = vector.broadcast %289 : vector<16x1xf32> to vector<16x32xf32>
    %291 = arith.subf %281, %290 : vector<16x32xf32>
    %292 = arith.mulf %291, %291 : vector<16x32xf32>
    %cst_143 = arith.constant dense<0.000000e+00> : vector<16xf32>
    %293 = vector.multi_reduction <add>, %292, %cst_143 [1] : vector<16x32xf32> to vector<16xf32>
    %294 = vector.shape_cast %293 : vector<16xf32> to vector<16x1xf32>
    %cst_144 = arith.constant 3.200000e+01 : f32
    %295 = vector.broadcast %cst_144 : f32 to vector<16x1xf32>
    %296 = arith.divf %294, %295 : vector<16x1xf32>
    %cst_145 = arith.constant 9.99999974E-6 : f32
    %297 = vector.broadcast %cst_145 : f32 to vector<16x1xf32>
    %298 = arith.addf %296, %297 : vector<16x1xf32>
    %299 = math.rsqrt %298 : vector<16x1xf32>
    %300 = vector.broadcast %299 : vector<16x1xf32> to vector<16x32xf32>
    %301 = arith.mulf %291, %300 : vector<16x32xf32>
    %302 = vector.broadcast %283 : vector<1x32xf32> to vector<16x32xf32>
    %303 = arith.mulf %301, %302 : vector<16x32xf32>
    %304 = vector.broadcast %285 : vector<1x32xf32> to vector<16x32xf32>
    %305 = arith.addf %303, %304 : vector<16x32xf32>
    %306 = vector.shape_cast %305 : vector<16x32xf32> to vector<2x8x32xf32>
    %cst_146 = arith.constant dense<0.000000e+00> : vector<2x32xf32>
    %307 = vector.multi_reduction <add>, %306, %cst_146 [1] : vector<2x8x32xf32> to vector<2x32xf32>
    %cst_147 = arith.constant 1.250000e-01 : f32
    %308 = vector.broadcast %cst_147 : f32 to vector<2x32xf32>
    %309 = arith.mulf %307, %308 : vector<2x32xf32>
    %c0_148 = arith.constant 0 : index
    %c0_149 = arith.constant 0 : index
    %310 = vector.load %arg19[%c0_148, %c0_149] : memref<1x32xf32, #tpu.memory_space<vmem>>, vector<1x32xf32>
    %311 = vector.broadcast %310 : vector<1x32xf32> to vector<2x32xf32>
    %312 = arith.mulf %309, %311 : vector<2x32xf32>
    %cst_150 = arith.constant dense<0.000000e+00> : vector<2xf32>
    %313 = vector.multi_reduction <add>, %312, %cst_150 [1] : vector<2x32xf32> to vector<2xf32>
    %314 = vector.shape_cast %313 : vector<2xf32> to vector<2x1xf32>
    %c0_151 = arith.constant 0 : index
    %c0_152 = arith.constant 0 : index
    %315 = vector.load %arg20[%c0_151, %c0_152] : memref<1x1xf32, #tpu.memory_space<vmem>>, vector<1x1xf32>
    %316 = vector.broadcast %315 : vector<1x1xf32> to vector<2x1xf32>
    %317 = arith.addf %314, %316 : vector<2x1xf32>
    %c0_153 = arith.constant 0 : index
    %c0_154 = arith.constant 0 : index
    %318 = vector.load %arg21[%c0_153, %c0_154] : memref<2x1xf32, #tpu.memory_space<vmem>>, vector<2x1xf32>
    tpu.vector_store %arg21[%c0_153, %c0_154], %317 {strides = array<i32>} : memref<2x1xf32, #tpu.memory_space<vmem>>, vector<2x1xf32>,
    return
  }
}

</mosaic_0001>

<llo_original>
// kernel: tpu_custom_call.1
$region0: #{tpu_custom_call.1}
  #allocation0 [shape = 'u32[]', space=smem, size = 0x4, offset = 0x4, fixed_abs, tag = 'smem constant byte address 0x4 - core index']
  #allocation1 [shape = 'u32[72,128]{1,0:T(1,128)}', space=vmem, size = 0x9000, scoped, tag = 'internal scratch']
  #allocation2 [shape = 'f32[1,1]{1,0:T(1,128)S(1)}', space=vmem, size = 0x200, scoped, tag = 'scoped memory for tpu_custom_call.1']
  %s0 = inlined_call_operand.vmem [shape: s32[16,1], index: 0, kind: input, shape index: {}]
  %s1 = inlined_call_operand.vmem [shape: s32[2,8], index: 1, kind: input, shape index: {}]
  %s2 = inlined_call_operand.vmem [shape: f32[16,32], index: 2, kind: input, shape index: {}]
  %s3 = inlined_call_operand.vmem [shape: f32[2,32,32], index: 3, kind: input, shape index: {}]
  %s4 = inlined_call_operand.vmem [shape: f32[2,1,32], index: 4, kind: input, shape index: {}]
  %s5 = inlined_call_operand.vmem [shape: f32[2,32,32], index: 5, kind: input, shape index: {}]
  %s6 = inlined_call_operand.vmem [shape: f32[2,1,32], index: 6, kind: input, shape index: {}]
  %s7 = inlined_call_operand.vmem [shape: f32[2,32,32], index: 7, kind: input, shape index: {}]
  %s8 = inlined_call_operand.vmem [shape: f32[2,1,32], index: 8, kind: input, shape index: {}]
  %s9 = inlined_call_operand.hbm [shape: f32[2,32,32], index: 9, kind: input, shape index: {}]
  %s10 = inlined_call_operand.vmem [shape: f32[2,1,32], index: 10, kind: input, shape index: {}]
  %s11 = inlined_call_operand.vmem [shape: f32[2,1,32], index: 11, kind: input, shape index: {}]
  %s12 = inlined_call_operand.hbm [shape: f32[2,1,32], index: 12, kind: input, shape index: {}]
  %s13 = inlined_call_operand.hbm [shape: f32[2,32,64], index: 13, kind: input, shape index: {}]
  %s14 = inlined_call_operand.vmem [shape: f32[2,1,64], index: 14, kind: input, shape index: {}]
  %s15 = inlined_call_operand.vmem [shape: f32[2,64,32], index: 15, kind: input, shape index: {}]
  %s16 = inlined_call_operand.vmem [shape: f32[2,1,32], index: 16, kind: input, shape index: {}]
  %s17 = inlined_call_operand.vmem [shape: f32[2,1,32], index: 17, kind: input, shape index: {}]
  %s18 = inlined_call_operand.hbm [shape: f32[2,1,32], index: 18, kind: input, shape index: {}]
  %s19 = inlined_call_operand.vmem [shape: f32[1,32], index: 19, kind: input, shape index: {}]
  %s20 = inlined_call_operand.<no memory space> [shape: f32[1,1], index: 20, kind: input, shape index: {}]
  %s21 = inlined_call_operand.vmem [shape: f32[2,1], index: 21, kind: output, shape index: {}]
  %s22 = sld [smem:[#allocation0]]
  $region110: #{tpu_custom_call.1} parent=0
    _
  %s24 = ssub.s32 1, %s22
  %s25 = scalar_select 0, %s24, %s22
  %v26 = vstv %s20
  %27 = vst [vmem:[#allocation2] sm:$0x1] %v26
  $region1: #{tpu_custom_call.1} parent=0
    #allocation3 [shape = 'u8[32768]{0}', space=vmem, size = 0x8000, scoped, tag = 'input window, operand 9, single buffered']
    #allocation4 [shape = 's32[1]{0}', space=sflag, size = 0x4, scoped, tag = 'scoped memory for tpu_custom_call.1']
    #allocation5 [shape = 'u8[1024]{0}', space=vmem, size = 0x400, scoped, tag = 'input window, operand 12, single buffered']
    #allocation6 [shape = 's32[1]{0}', space=sflag, size = 0x4, scoped, tag = 'scoped memory for tpu_custom_call.1']
    #allocation7 [shape = 'u8[32768]{0}', space=vmem, size = 0x8000, scoped, tag = 'input window, operand 13, single buffered']
    #allocation8 [shape = 'u8[1024]{0}', space=vmem, size = 0x400, scoped, tag = 'input window, operand 18, single buffered']
    #allocation9 [shape = 's32[1]{0}', space=sflag, size = 0x4, scoped, tag = 'scoped memory for tpu_custom_call.1']
    %28 = vsyncpa [#allocation4], 0
    %29 = vsyncpa [#allocation6], 0
    %30 = vsyncpa [#allocation9], 0
    // Predicated region
    $region2: #{tpu_custom_call.1} parent=1 // pred_check
      _
    $region3: #{tpu_custom_call.1} parent=1 // pred_check_branch
      %32 = sbr.rel (0) target = $region5
    $region4: #{tpu_custom_call.1} parent=1 // pred_region
      _
    $region5: #{tpu_custom_call.1} parent=1 // pred_fallthru
      _
    // Predicated region
    $region6: #{tpu_custom_call.1} parent=1 // pred_check
      _
    $region7: #{tpu_custom_call.1} parent=1 // pred_check_branch
      %34 = sbr.rel (0) target = $region9
    $region8: #{tpu_custom_call.1} parent=1 // pred_region
      _
    $region9: #{tpu_custom_call.1} parent=1 // pred_fallthru
      _
    // Predicated region
    $region10: #{tpu_custom_call.1} parent=1 // pred_check
      _
    $region11: #{tpu_custom_call.1} parent=1 // pred_check_branch
      %36 = sbr.rel (0) target = $region13
    $region12: #{tpu_custom_call.1} parent=1 // pred_region
      _
    $region13: #{tpu_custom_call.1} parent=1 // pred_fallthru
      _
    // Predicated region
    $region14: #{tpu_custom_call.1} parent=1 // pred_check
      _
    $region15: #{tpu_custom_call.1} parent=1 // pred_check_branch
      %38 = sbr.rel (0) target = $region17
    $region16: #{tpu_custom_call.1} parent=1 // pred_region
      _
    $region17: #{tpu_custom_call.1} parent=1 // pred_fallthru
      _
    // Predicated region
    $region18: #{tpu_custom_call.1} parent=1 // pred_check
      _
    $region19: #{tpu_custom_call.1} parent=1 // pred_check_branch
      %40 = sbr.rel (0) target = $region21
    $region20: #{tpu_custom_call.1} parent=1 // pred_region
      _
    $region21: #{tpu_custom_call.1} parent=1 // pred_fallthru
      _
    // Predicated region
    $region22: #{tpu_custom_call.1} parent=1 // pred_check
      _
    $region23: #{tpu_custom_call.1} parent=1 // pred_check_branch
      %42 = sbr.rel (0) target = $region25
    $region24: #{tpu_custom_call.1} parent=1 // pred_region
      _
    $region25: #{tpu_custom_call.1} parent=1 // pred_fallthru
      _
    // Predicated region
    $region26: #{tpu_custom_call.1} parent=1 // pred_check
      _
    $region27: #{tpu_custom_call.1} parent=1 // pred_check_branch
      %44 = sbr.rel (0) target = $region29
    $region28: #{tpu_custom_call.1} parent=1 // pred_region
      _
    $region29: #{tpu_custom_call.1} parent=1 // pred_fallthru
      _
    // Predicated region
    $region30: #{tpu_custom_call.1} parent=1 // pred_check
      _
    $region31: #{tpu_custom_call.1} parent=1 // pred_check_branch
      %46 = sbr.rel (0) target = $region33
    $region32: #{tpu_custom_call.1} parent=1 // pred_region
      _
    $region33: #{tpu_custom_call.1} parent=1 // pred_fallthru
      _
    // Predicated region
    $region34: #{tpu_custom_call.1} parent=1 // pred_check
      _
    $region35: #{tpu_custom_call.1} parent=1 // pred_check_branch
      %48 = sbr.rel (0) target = $region37
    $region36: #{tpu_custom_call.1} parent=1 // pred_region
      _
    $region37: #{tpu_custom_call.1} parent=1 // pred_fallthru
      _
    // Predicated region
    $region38: #{tpu_custom_call.1} parent=1 // pred_check
      _
    $region39: #{tpu_custom_call.1} parent=1 // pred_check_branch
      %50 = sbr.rel (0) target = $region41
    $region40: #{tpu_custom_call.1} parent=1 // pred_region
      %52 = vsyncadd [#allocation4], 0
      %s53 = sshll.u32 %s9, 4
      %s54 = int_to_ptr.hbm [resolvable:$true] %s53
      %s55 = sshll.u32 [#allocation3], 4
      %s56 = int_to_ptr.vmem [resolvable:$true] %s55
      %61 = dma.hbm_to_vmem [thread:$0]  %s54, 1024, %s56, [#allocation4], 128, 128, 8
    $region41: #{tpu_custom_call.1} parent=1 // pred_fallthru
      _
    // Predicated region
    $region42: #{tpu_custom_call.1} parent=1 // pred_check
      _
    $region43: #{tpu_custom_call.1} parent=1 // pred_check_branch
      %63 = sbr.rel (0) target = $region45
    $region44: #{tpu_custom_call.1} parent=1 // pred_region
      _
    $region45: #{tpu_custom_call.1} parent=1 // pred_fallthru
      _
    // Predicated region
    $region46: #{tpu_custom_call.1} parent=1 // pred_check
      _
    $region47: #{tpu_custom_call.1} parent=1 // pred_check_branch
      %65 = sbr.rel (0) target = $region49
    $region48: #{tpu_custom_call.1} parent=1 // pred_region
      _
    $region49: #{tpu_custom_call.1} parent=1 // pred_fallthru
      _
    // Predicated region
    $region50: #{tpu_custom_call.1} parent=1 // pred_check
      _
    $region51: #{tpu_custom_call.1} parent=1 // pred_check_branch
      %67 = sbr.rel (0) target = $region53
    $region52: #{tpu_custom_call.1} parent=1 // pred_region
      %69 = vsyncadd [#allocation6], 0
      %s70 = sshll.u32 %s12, 4
      %s71 = int_to_ptr.hbm [resolvable:$true] %s70
      %s72 = sshll.u32 [#allocation5], 4
      %s73 = int_to_ptr.vmem [resolvable:$true] %s72
      %78 = dma.hbm_to_vmem [thread:$0]  %s71, 32, %s73, [#allocation6], 16, 16, 1
    $region53: #{tpu_custom_call.1} parent=1 // pred_fallthru
      _
    // Predicated region
    $region54: #{tpu_custom_call.1} parent=1 // pred_check
      _
    $region55: #{tpu_custom_call.1} parent=1 // pred_check_branch
      %80 = sbr.rel (0) target = $region57
    $region56: #{tpu_custom_call.1} parent=1 // pred_region
      %82 = vsyncadd [#allocation6], 0
      %s83 = sshll.u32 %s13, 4
      %s84 = int_to_ptr.hbm [resolvable:$true] %s83
      %s85 = sshll.u32 [#allocation7], 4
      %s86 = int_to_ptr.vmem [resolvable:$true] %s85
      %91 = dma.hbm_to_vmem [thread:$0]  %s84, 1024, %s86, [#allocation6], 128, 128, 8
    $region57: #{tpu_custom_call.1} parent=1 // pred_fallthru
      _
    // Predicated region
    $region58: #{tpu_custom_call.1} parent=1 // pred_check
      _
    $region59: #{tpu_custom_call.1} parent=1 // pred_check_branch
      %93 = sbr.rel (0) target = $region61
    $region60: #{tpu_custom_call.1} parent=1 // pred_region
      _
    $region61: #{tpu_custom_call.1} parent=1 // pred_fallthru
      _
    // Predicated region
    $region62: #{tpu_custom_call.1} parent=1 // pred_check
      _
    $region63: #{tpu_custom_call.1} parent=1 // pred_check_branch
      %95 = sbr.rel (0) target = $region65
    $region64: #{tpu_custom_call.1} parent=1 // pred_region
      _
    $region65: #{tpu_custom_call.1} parent=1 // pred_fallthru
      _
    // Predicated region
    $region66: #{tpu_custom_call.1} parent=1 // pred_check
      _
    $region67: #{tpu_custom_call.1} parent=1 // pred_check_branch
      %97 = sbr.rel (0) target = $region69
    $region68: #{tpu_custom_call.1} parent=1 // pred_region
      _
    $region69: #{tpu_custom_call.1} parent=1 // pred_fallthru
      _
    // Predicated region
    $region70: #{tpu_custom_call.1} parent=1 // pred_check
      _
    $region71: #{tpu_custom_call.1} parent=1 // pred_check_branch
      %99 = sbr.rel (0) target = $region73
    $region72: #{tpu_custom_call.1} parent=1 // pred_region
      _
    $region73: #{tpu_custom_call.1} parent=1 // pred_fallthru
      _
    // Predicated region
    $region74: #{tpu_custom_call.1} parent=1 // pred_check
      _
    $region75: #{tpu_custom_call.1} parent=1 // pred_check_branch
      %101 = sbr.rel (0) target = $region77
    $region76: #{tpu_custom_call.1} parent=1 // pred_region
      %103 = vsyncadd [#allocation9], 0
      %s104 = sshll.u32 %s18, 4
      %s105 = int_to_ptr.hbm [resolvable:$true] %s104
      %s106 = sshll.u32 [#allocation8], 4
      %s107 = int_to_ptr.vmem [resolvable:$true] %s106
      %112 = dma.hbm_to_vmem [thread:$0]  %s105, 32, %s107, [#allocation9], 16, 16, 1
    $region77: #{tpu_custom_call.1} parent=1 // pred_fallthru
      _
    // Predicated region
    $region78: #{tpu_custom_call.1} parent=1 // pred_check
      _
    $region79: #{tpu_custom_call.1} parent=1 // pred_check_branch
      %114 = sbr.rel (0) target = $region81
    $region80: #{tpu_custom_call.1} parent=1 // pred_region
      _
    $region81: #{tpu_custom_call.1} parent=1 // pred_fallthru
      _
    // Predicated region
    $region82: #{tpu_custom_call.1} parent=1 // pred_check
      _
    $region83: #{tpu_custom_call.1} parent=1 // pred_check_branch
      %116 = sbr.rel (0) target = $region85
    $region84: #{tpu_custom_call.1} parent=1 // pred_region
      _
    $region85: #{tpu_custom_call.1} parent=1 // pred_fallthru
      _
    // Predicated region
    $region86: #{tpu_custom_call.1} parent=1 // pred_check
      _
    $region87: #{tpu_custom_call.1} parent=1 // pred_check_branch
      %118 = sbr.rel (0) target = $region89
    $region88: #{tpu_custom_call.1} parent=1 // pred_region
      %120 = dma.done [#allocation4], 1024
    $region89: #{tpu_custom_call.1} parent=1 // pred_fallthru
      _
    // Predicated region
    $region90: #{tpu_custom_call.1} parent=1 // pred_check
      _
    $region91: #{tpu_custom_call.1} parent=1 // pred_check_branch
      %122 = sbr.rel (0) target = $region93
    $region92: #{tpu_custom_call.1} parent=1 // pred_region
      %124 = dma.done [#allocation6], 32
    $region93: #{tpu_custom_call.1} parent=1 // pred_fallthru
      _
    // Predicated region
    $region94: #{tpu_custom_call.1} parent=1 // pred_check
      _
    $region95: #{tpu_custom_call.1} parent=1 // pred_check_branch
      %126 = sbr.rel (0) target = $region97
    $region96: #{tpu_custom_call.1} parent=1 // pred_region
      %128 = dma.done [#allocation6], 1024
    $region97: #{tpu_custom_call.1} parent=1 // pred_fallthru
      _
    // Predicated region
    $region98: #{tpu_custom_call.1} parent=1 // pred_check
      _
    $region99: #{tpu_custom_call.1} parent=1 // pred_check_branch
      %130 = sbr.rel (0) target = $region101
    $region100: #{tpu_custom_call.1} parent=1 // pred_region
      %132 = dma.done [#allocation9], 32
    $region101: #{tpu_custom_call.1} parent=1 // pred_fallthru
      _
    %v133 = vld [vmem:[%s0] sm:$0xff]
    %v134 = vld [vmem:[%s0 + $0x8] sm:$0xff]
    %v135 = vlaneseq
    %v136 = vand.u32 %v135, 127
    %137 = vset.pattern.permute.xlu0 0
    %138 = vperm.xlu0 %137, %v133
    %v139 = vpop.permute.xlu0 %138
    %140 = vset.pattern.permute.xlu0 0
    %141 = vperm.xlu0 %140, %v134
    %v142 = vpop.permute.xlu0 %141
    %vm143 = vcmp.eq.s32.totalorder %v136, %v139
    %vm144 = vcmp.eq.s32.totalorder %v136, %v142
    %v145 = vsel %vm143, 1, 0
    %v146 = vsel %vm144, 1, 0
    %v147 = vcvt.s32.f32 %v145
    %v148 = vcvt.s32.f32 %v146
    %v149 = vld [vmem:[%s2] sm:$0xff]
    %v150 = vld [vmem:[%s2 + $0x8] sm:$0xff]
    %vm151 = vcmask 130048
    %v153 = vsel %vm151, %v147, 0
    %v156 = vsel %vm151, %v148, 0
    %158 = vmatpush.msra.mxu0 0.0
    %159 = vmatpush.msra.mxu0 0.0
    %160 = vmatpush.msra.mxu0 0.0
    %161 = vmatpush.msra.mxu0 0.0
    %162 = vmatpush.msra.mxu0 0.0
    %163 = vmatpush.msra.mxu0 0.0
    %164 = vmatpush.msra.mxu0 0.0
    %165 = vmatpush.msra.mxu0 0.0
    %166 = vmatpush.msra.mxu0 0.0
    %167 = vmatpush.msra.mxu0 0.0
    %168 = vmatpush.msra.mxu0 0.0
    %169 = vmatpush.msra.mxu0 0.0
    %170 = vmatpush.msra.mxu0 0.0
    %171 = vmatpush.msra.mxu0 0.0
    %172 = vmatpush.msra.mxu0 %v150
    %173 = vmatpush.msra.mxu0 %v149
    %174 = vmatmul.f32.gmra.mxu0 %v153
    %v175 = vpop.f32.mrf.mxu0
    %v176 = vadd.f32 0.0, %v175
    %177 = vmatmul.f32.gmra.mxu0 %v156
    %v178 = vpop.f32.mrf.mxu0
    %v179 = vadd.f32 0.0, %v178
    %180 = vdwg.mxu0
    %v181 = vld [vmem:[%s1] sm:$0x3]
    %vm182 = vcmp.eq.s32.totalorder %v181, 0
    %v183 = vsel %vm182, -1e+30, 0.0
    %v185 = vrot.slane %v183, 1
    %v186 = vld [vmem:[%s3] sm:$0xff]
    %v187 = vld [vmem:[%s3 + $0x8] sm:$0xff]
    %v188 = vld [vmem:[%s3 + $0x10] sm:$0xff]
    %v189 = vld [vmem:[%s3 + $0x18] sm:$0xff]
    %v190 = vld [vmem:[%s4] sm:$0x1]
    %v192 = vperm.slane %v190, 0
    %vm194 = vcmask 261120
    %v196 = vsel %vm194, %v176, 0
    %v199 = vsel %vm194, %v179, 0
    %201 = vmatpush.msra.mxu0 0.0
    %202 = vmatpush.msra.mxu0 0.0
    %203 = vmatpush.msra.mxu0 0.0
    %204 = vmatpush.msra.mxu0 0.0
    %205 = vmatpush.msra.mxu0 0.0
    %206 = vmatpush.msra.mxu0 0.0
    %207 = vmatpush.msra.mxu0 0.0
    %208 = vmatpush.msra.mxu0 0.0
    %209 = vmatpush.msra.mxu0 0.0
    %210 = vmatpush.msra.mxu0 0.0
    %211 = vmatpush.msra.mxu0 0.0
    %212 = vmatpush.msra.mxu0 0.0
    %213 = vmatpush.msra.mxu0 %v189
    %214 = vmatpush.msra.mxu0 %v188
    %215 = vmatpush.msra.mxu0 %v187
    %216 = vmatpush.msra.mxu0 %v186
    %217 = vmatmul.f32.gmra.mxu0 %v196
    %v218 = vpop.f32.mrf.mxu0
    %v219 = vadd.f32 %v192, %v218
    %220 = vmatmul.f32.gmra.mxu0 %v199
    %v221 = vpop.f32.mrf.mxu0
    %v222 = vadd.f32 %v192, %v221
    %223 = vdwg.mxu0
    %v224 = vmul.f32 %v219, 0.35355338
    %v225 = vmul.f32 %v222, 0.35355338
    %v226 = vld [vmem:[%s5] sm:$0xff]
    %v227 = vld [vmem:[%s5 + $0x8] sm:$0xff]
    %v228 = vld [vmem:[%s5 + $0x10] sm:$0xff]
    %v229 = vld [vmem:[%s5 + $0x18] sm:$0xff]
    %v230 = vld [vmem:[%s6] sm:$0x1]
    %v232 = vperm.slane %v230, 0
    %234 = vmatpush.msra.mxu0 0.0
    %235 = vmatpush.msra.mxu0 0.0
    %236 = vmatpush.msra.mxu0 0.0
    %237 = vmatpush.msra.mxu0 0.0
    %238 = vmatpush.msra.mxu0 0.0
    %239 = vmatpush.msra.mxu0 0.0
    %240 = vmatpush.msra.mxu0 0.0
    %241 = vmatpush.msra.mxu0 0.0
    %242 = vmatpush.msra.mxu0 0.0
    %243 = vmatpush.msra.mxu0 0.0
    %244 = vmatpush.msra.mxu0 0.0
    %245 = vmatpush.msra.mxu0 0.0
    %246 = vmatpush.msra.mxu0 %v229
    %247 = vmatpush.msra.mxu0 %v228
    %248 = vmatpush.msra.mxu0 %v227
    %249 = vmatpush.msra.mxu0 %v226
    %250 = vmatmul.f32.gmra.mxu0 %v196
    %v251 = vpop.f32.mrf.mxu0
    %v252 = vadd.f32 %v232, %v251
    %253 = vmatmul.f32.gmra.mxu0 %v199
    %v254 = vpop.f32.mrf.mxu0
    %v255 = vadd.f32 %v232, %v254
    %256 = vdwg.mxu0
    %v257 = vld [vmem:[%s7] sm:$0xff]
    %v258 = vld [vmem:[%s7 + $0x8] sm:$0xff]
    %v259 = vld [vmem:[%s7 + $0x10] sm:$0xff]
    %v260 = vld [vmem:[%s7 + $0x18] sm:$0xff]
    %v261 = vld [vmem:[%s8] sm:$0x1]
    %v263 = vperm.slane %v261, 0
    %265 = vmatpush.msra.mxu0 0.0
    %266 = vmatpush.msra.mxu0 0.0
    %267 = vmatpush.msra.mxu0 0.0
    %268 = vmatpush.msra.mxu0 0.0
    %269 = vmatpush.msra.mxu0 0.0
    %270 = vmatpush.msra.mxu0 0.0
    %271 = vmatpush.msra.mxu0 0.0
    %272 = vmatpush.msra.mxu0 0.0
    %273 = vmatpush.msra.mxu0 0.0
    %274 = vmatpush.msra.mxu0 0.0
    %275 = vmatpush.msra.mxu0 0.0
    %276 = vmatpush.msra.mxu0 0.0
    %277 = vmatpush.msra.mxu0 %v260
    %278 = vmatpush.msra.mxu0 %v259
    %279 = vmatpush.msra.mxu0 %v258
    %280 = vmatpush.msra.mxu0 %v257
    %281 = vmatmul.f32.gmra.mxu0 %v196
    %v282 = vpop.f32.mrf.mxu0
    %v283 = vadd.f32 %v263, %v282
    %284 = vmatmul.f32.gmra.mxu0 %v199
    %v285 = vpop.f32.mrf.mxu0
    %v286 = vadd.f32 %v263, %v285
    %287 = vdwg.mxu0
    %290 = vrot.lane.b32.xlu0 %v224, 120
    %v291 = vpop.permute.xlu0 %290
    %292 = vrot.lane.b32.xlu0 %v225, 120
    %v293 = vpop.permute.xlu0 %292
    %294 = vrot.lane.b32.xlu0 %v224, 112
    %v295 = vpop.permute.xlu0 %294
    %296 = vrot.lane.b32.xlu0 %v225, 112
    %v297 = vpop.permute.xlu0 %296
    %298 = vrot.lane.b32.xlu0 %v224, 104
    %v299 = vpop.permute.xlu0 %298
    %300 = vrot.lane.b32.xlu0 %v225, 104
    %v301 = vpop.permute.xlu0 %300
    %304 = vrot.lane.b32.xlu0 %v252, 120
    %v305 = vpop.permute.xlu0 %304
    %306 = vrot.lane.b32.xlu0 %v255, 120
    %v307 = vpop.permute.xlu0 %306
    %308 = vrot.lane.b32.xlu0 %v252, 112
    %v309 = vpop.permute.xlu0 %308
    %310 = vrot.lane.b32.xlu0 %v255, 112
    %v311 = vpop.permute.xlu0 %310
    %312 = vrot.lane.b32.xlu0 %v252, 104
    %v313 = vpop.permute.xlu0 %312
    %314 = vrot.lane.b32.xlu0 %v255, 104
    %v315 = vpop.permute.xlu0 %314
    %318 = vrot.lane.b32.xlu0 %v283, 120
    %v319 = vpop.permute.xlu0 %318
    %320 = vrot.lane.b32.xlu0 %v286, 120
    %v321 = vpop.permute.xlu0 %320
    %324 = vrot.lane.b32.xlu0 %v283, 112
    %v325 = vpop.permute.xlu0 %324
    %326 = vrot.lane.b32.xlu0 %v286, 112
    %v327 = vpop.permute.xlu0 %326
    %330 = vrot.lane.b32.xlu0 %v283, 104
    %v331 = vpop.permute.xlu0 %330
    %332 = vrot.lane.b32.xlu0 %v286, 104
    %v333 = vpop.permute.xlu0 %332
    %v336 = vperm.slane %v183, 0
    %v337 = vperm.slane %v185, 0
    %vm340 = vcmask 64512
    %v341 = vsel %vm340, %v224, 0
    %v343 = vsel %vm340, %v252, 0
    %345 = vmatpush.xpose.msra.mxu0 0.0
    %346 = vmatpush.xpose.msra.mxu0 0.0
    %347 = vmatpush.xpose.msra.mxu0 0.0
    %348 = vmatpush.xpose.msra.mxu0 0.0
    %349 = vmatpush.xpose.msra.mxu0 0.0
    %350 = vmatpush.xpose.msra.mxu0 0.0
    %351 = vmatpush.xpose.msra.mxu0 0.0
    %352 = vmatpush.xpose.msra.mxu0 0.0
    %353 = vmatpush.xpose.msra.mxu0 0.0
    %354 = vmatpush.xpose.msra.mxu0 0.0
    %355 = vmatpush.xpose.msra.mxu0 0.0
    %356 = vmatpush.xpose.msra.mxu0 0.0
    %357 = vmatpush.xpose.msra.mxu0 0.0
    %358 = vmatpush.xpose.msra.mxu0 0.0
    %359 = vmatpush.xpose.msra.mxu0 0.0
    %360 = vmatpush.xpose.msra.mxu0 %v343
    %361 = vmatmul.f32.gmra.mxu0 %v341
    %v362 = vpop.f32.mrf.mxu0
    %v363 = vadd.f32 %v336, %v362
    %364 = vdwg.mxu0
    %v365 = vsel %vm340, %v225, 0
    %v367 = vsel %vm340, %v255, 0
    %369 = vmatpush.xpose.msra.mxu0 0.0
    %370 = vmatpush.xpose.msra.mxu0 0.0
    %371 = vmatpush.xpose.msra.mxu0 0.0
    %372 = vmatpush.xpose.msra.mxu0 0.0
    %373 = vmatpush.xpose.msra.mxu0 0.0
    %374 = vmatpush.xpose.msra.mxu0 0.0
    %375 = vmatpush.xpose.msra.mxu0 0.0
    %376 = vmatpush.xpose.msra.mxu0 0.0
    %377 = vmatpush.xpose.msra.mxu0 0.0
    %378 = vmatpush.xpose.msra.mxu0 0.0
    %379 = vmatpush.xpose.msra.mxu0 0.0
    %380 = vmatpush.xpose.msra.mxu0 0.0
    %381 = vmatpush.xpose.msra.mxu0 0.0
    %382 = vmatpush.xpose.msra.mxu0 0.0
    %383 = vmatpush.xpose.msra.mxu0 0.0
    %384 = vmatpush.xpose.msra.mxu0 %v367
    %385 = vmatmul.f32.gmra.mxu0 %v365
    %v386 = vpop.f32.mrf.mxu0
    %v387 = vadd.f32 %v337, %v386
    %388 = vdwg.mxu0
    %v389 = vsel %vm340, %v291, 0
    %v391 = vsel %vm340, %v305, 0
    %393 = vmatpush.xpose.msra.mxu0 0.0
    %394 = vmatpush.xpose.msra.mxu0 0.0
    %395 = vmatpush.xpose.msra.mxu0 0.0
    %396 = vmatpush.xpose.msra.mxu0 0.0
    %397 = vmatpush.xpose.msra.mxu0 0.0
    %398 = vmatpush.xpose.msra.mxu0 0.0
    %399 = vmatpush.xpose.msra.mxu0 0.0
    %400 = vmatpush.xpose.msra.mxu0 0.0
    %401 = vmatpush.xpose.msra.mxu0 0.0
    %402 = vmatpush.xpose.msra.mxu0 0.0
    %403 = vmatpush.xpose.msra.mxu0 0.0
    %404 = vmatpush.xpose.msra.mxu0 0.0
    %405 = vmatpush.xpose.msra.mxu0 0.0
    %406 = vmatpush.xpose.msra.mxu0 0.0
    %407 = vmatpush.xpose.msra.mxu0 0.0
    %408 = vmatpush.xpose.msra.mxu0 %v391
    %409 = vmatmul.f32.gmra.mxu0 %v389
    %v410 = vpop.f32.mrf.mxu0
    %v411 = vadd.f32 %v336, %v410
    %412 = vdwg.mxu0
    %v413 = vsel %vm340, %v293, 0
    %v415 = vsel %vm340, %v307, 0
    %417 = vmatpush.xpose.msra.mxu0 0.0
    %418 = vmatpush.xpose.msra.mxu0 0.0
    %419 = vmatpush.xpose.msra.mxu0 0.0
    %420 = vmatpush.xpose.msra.mxu0 0.0
    %421 = vmatpush.xpose.msra.mxu0 0.0
    %422 = vmatpush.xpose.msra.mxu0 0.0
    %423 = vmatpush.xpose.msra.mxu0 0.0
    %424 = vmatpush.xpose.msra.mxu0 0.0
    %425 = vmatpush.xpose.msra.mxu0 0.0
    %426 = vmatpush.xpose.msra.mxu0 0.0
    %427 = vmatpush.xpose.msra.mxu0 0.0
    %428 = vmatpush.xpose.msra.mxu0 0.0
    %429 = vmatpush.xpose.msra.mxu0 0.0
    %430 = vmatpush.xpose.msra.mxu0 0.0
    %431 = vmatpush.xpose.msra.mxu0 0.0
    %432 = vmatpush.xpose.msra.mxu0 %v415
    %433 = vmatmul.f32.gmra.mxu0 %v413
    %v434 = vpop.f32.mrf.mxu0
    %v435 = vadd.f32 %v337, %v434
    %436 = vdwg.mxu0
    %v437 = vsel %vm340, %v295, 0
    %v439 = vsel %vm340, %v309, 0
    %441 = vmatpush.xpose.msra.mxu0 0.0
    %442 = vmatpush.xpose.msra.mxu0 0.0
    %443 = vmatpush.xpose.msra.mxu0 0.0
    %444 = vmatpush.xpose.msra.mxu0 0.0
    %445 = vmatpush.xpose.msra.mxu0 0.0
    %446 = vmatpush.xpose.msra.mxu0 0.0
    %447 = vmatpush.xpose.msra.mxu0 0.0
    %448 = vmatpush.xpose.msra.mxu0 0.0
    %449 = vmatpush.xpose.msra.mxu0 0.0
    %450 = vmatpush.xpose.msra.mxu0 0.0
    %451 = vmatpush.xpose.msra.mxu0 0.0
    %452 = vmatpush.xpose.msra.mxu0 0.0
    %453 = vmatpush.xpose.msra.mxu0 0.0
    %454 = vmatpush.xpose.msra.mxu0 0.0
    %455 = vmatpush.xpose.msra.mxu0 0.0
    %456 = vmatpush.xpose.msra.mxu0 %v439
    %457 = vmatmul.f32.gmra.mxu0 %v437
    %v458 = vpop.f32.mrf.mxu0
    %v459 = vadd.f32 %v336, %v458
    %460 = vdwg.mxu0
    %v461 = vsel %vm340, %v297, 0
    %v463 = vsel %vm340, %v311, 0
    %465 = vmatpush.xpose.msra.mxu0 0.0
    %466 = vmatpush.xpose.msra.mxu0 0.0
    %467 = vmatpush.xpose.msra.mxu0 0.0
    %468 = vmatpush.xpose.msra.mxu0 0.0
    %469 = vmatpush.xpose.msra.mxu0 0.0
    %470 = vmatpush.xpose.msra.mxu0 0.0
    %471 = vmatpush.xpose.msra.mxu0 0.0
    %472 = vmatpush.xpose.msra.mxu0 0.0
    %473 = vmatpush.xpose.msra.mxu0 0.0
    %474 = vmatpush.xpose.msra.mxu0 0.0
    %475 = vmatpush.xpose.msra.mxu0 0.0
    %476 = vmatpush.xpose.msra.mxu0 0.0
    %477 = vmatpush.xpose.msra.mxu0 0.0
    %478 = vmatpush.xpose.msra.mxu0 0.0
    %479 = vmatpush.xpose.msra.mxu0 0.0
    %480 = vmatpush.xpose.msra.mxu0 %v463
    %481 = vmatmul.f32.gmra.mxu0 %v461
    %v482 = vpop.f32.mrf.mxu0
    %v483 = vadd.f32 %v337, %v482
    %484 = vdwg.mxu0
    %v485 = vsel %vm340, %v299, 0
    %v487 = vsel %vm340, %v313, 0
    %489 = vmatpush.xpose.msra.mxu0 0.0
    %490 = vmatpush.xpose.msra.mxu0 0.0
    %491 = vmatpush.xpose.msra.mxu0 0.0
    %492 = vmatpush.xpose.msra.mxu0 0.0
    %493 = vmatpush.xpose.msra.mxu0 0.0
    %494 = vmatpush.xpose.msra.mxu0 0.0
    %495 = vmatpush.xpose.msra.mxu0 0.0
    %496 = vmatpush.xpose.msra.mxu0 0.0
    %497 = vmatpush.xpose.msra.mxu0 0.0
    %498 = vmatpush.xpose.msra.mxu0 0.0
    %499 = vmatpush.xpose.msra.mxu0 0.0
    %500 = vmatpush.xpose.msra.mxu0 0.0
    %501 = vmatpush.xpose.msra.mxu0 0.0
    %502 = vmatpush.xpose.msra.mxu0 0.0
    %503 = vmatpush.xpose.msra.mxu0 0.0
    %504 = vmatpush.xpose.msra.mxu0 %v487
    %505 = vmatmul.f32.gmra.mxu0 %v485
    %v506 = vpop.f32.mrf.mxu0
    %v507 = vadd.f32 %v336, %v506
    %508 = vdwg.mxu0
    %v509 = vsel %vm340, %v301, 0
    %v511 = vsel %vm340, %v315, 0
    %513 = vmatpush.xpose.msra.mxu0 0.0
    %514 = vmatpush.xpose.msra.mxu0 0.0
    %515 = vmatpush.xpose.msra.mxu0 0.0
    %516 = vmatpush.xpose.msra.mxu0 0.0
    %517 = vmatpush.xpose.msra.mxu0 0.0
    %518 = vmatpush.xpose.msra.mxu0 0.0
    %519 = vmatpush.xpose.msra.mxu0 0.0
    %520 = vmatpush.xpose.msra.mxu0 0.0
    %521 = vmatpush.xpose.msra.mxu0 0.0
    %522 = vmatpush.xpose.msra.mxu0 0.0
    %523 = vmatpush.xpose.msra.mxu0 0.0
    %524 = vmatpush.xpose.msra.mxu0 0.0
    %525 = vmatpush.xpose.msra.mxu0 0.0
    %526 = vmatpush.xpose.msra.mxu0 0.0
    %527 = vmatpush.xpose.msra.mxu0 0.0
    %528 = vmatpush.xpose.msra.mxu0 %v511
    %529 = vmatmul.f32.gmra.mxu0 %v509
    %v530 = vpop.f32.mrf.mxu0
    %v531 = vadd.f32 %v337, %v530
    %532 = vdwg.mxu0
    %v533 = vsel %vm340, %v363, -inf
    %534 = vmax.xlane.f32.xlu0 %v533
    %v535 = vpop.xlane.xlu0 %534
    %v536 = vsel %vm340, %v387, -inf
    %537 = vmax.xlane.f32.xlu0 %v536
    %v538 = vpop.xlane.xlu0 %537
    %v539 = vsel %vm340, %v411, -inf
    %540 = vmax.xlane.f32.xlu0 %v539
    %v541 = vpop.xlane.xlu0 %540
    %v542 = vsel %vm340, %v435, -inf
    %543 = vmax.xlane.f32.xlu0 %v542
    %v544 = vpop.xlane.xlu0 %543
    %v545 = vsel %vm340, %v459, -inf
    %546 = vmax.xlane.f32.xlu0 %v545
    %v547 = vpop.xlane.xlu0 %546
    %v548 = vsel %vm340, %v483, -inf
    %549 = vmax.xlane.f32.xlu0 %v548
    %v550 = vpop.xlane.xlu0 %549
    %v551 = vsel %vm340, %v507, -inf
    %552 = vmax.xlane.f32.xlu0 %v551
    %v553 = vpop.xlane.xlu0 %552
    %v554 = vsel %vm340, %v531, -inf
    %555 = vmax.xlane.f32.xlu0 %v554
    %v556 = vpop.xlane.xlu0 %555
    %v557 = vsub.f32 %v363, %v535
    %v558 = vsub.f32 %v387, %v538
    %v559 = vsub.f32 %v411, %v541
    %v560 = vsub.f32 %v435, %v544
    %v561 = vsub.f32 %v459, %v547
    %v562 = vsub.f32 %v483, %v550
    %v563 = vsub.f32 %v507, %v553
    %v564 = vsub.f32 %v531, %v556
    %v565 = vmul.f32 %v557, 1.442695
    %v566 = vpow.pop %v565
    %v567 = vmul.f32 %v558, 1.442695
    %v568 = vpow.pop %v567
    %v569 = vmul.f32 %v559, 1.442695
    %v570 = vpow.pop %v569
    %v571 = vmul.f32 %v560, 1.442695
    %v572 = vpow.pop %v571
    %v573 = vmul.f32 %v561, 1.442695
    %v574 = vpow.pop %v573
    %v575 = vmul.f32 %v562, 1.442695
    %v576 = vpow.pop %v575
    %v577 = vmul.f32 %v563, 1.442695
    %v578 = vpow.pop %v577
    %v579 = vmul.f32 %v564, 1.442695
    %v580 = vpow.pop %v579
    %v581 = vsel %vm340, %v566, 0.0
    %582 = vadd.xlane.f32.xlu0 %v581
    %v583 = vpop.xlane.xlu0 %582
    %v584 = vsel %vm340, %v568, 0.0
    %585 = vadd.xlane.f32.xlu0 %v584
    %v586 = vpop.xlane.xlu0 %585
    %v587 = vsel %vm340, %v570, 0.0
    %588 = vadd.xlane.f32.xlu0 %v587
    %v589 = vpop.xlane.xlu0 %588
    %v590 = vsel %vm340, %v572, 0.0
    %591 = vadd.xlane.f32.xlu0 %v590
    %v592 = vpop.xlane.xlu0 %591
    %v593 = vsel %vm340, %v574, 0.0
    %594 = vadd.xlane.f32.xlu0 %v593
    %v595 = vpop.xlane.xlu0 %594
    %v596 = vsel %vm340, %v576, 0.0
    %597 = vadd.xlane.f32.xlu0 %v596
    %v598 = vpop.xlane.xlu0 %597
    %v599 = vsel %vm340, %v578, 0.0
    %600 = vadd.xlane.f32.xlu0 %v599
    %v601 = vpop.xlane.xlu0 %600
    %v602 = vsel %vm340, %v580, 0.0
    %603 = vadd.xlane.f32.xlu0 %v602
    %v604 = vpop.xlane.xlu0 %603
    %v605 = vrcp.pop %v583
    %v606 = vmul.f32 %v583, %v605
    %v607 = vsub.f32 1.0, %v606
    %v608 = vmul.f32 %v605, %v607
    %v609 = vadd.f32 %v605, %v608
    %vm610 = vweird.f32 %v583
    %vm611 = vweird.f32 %v605
    %vm612 = vmor %vm610, %vm611
    %v613 = vsel %vm612, %v605, %v609
    %v614 = vand.u32 2147483647, %v583
    %vm615 = vcmp.eq.f32.partialorder %v614, 8.507059e+37
    %v616 = vand.u32 %v583, 2147483648
    %v617 = vor.u32 1.1754944e-38, %v616
    %v618 = vsel %vm615, %v617, %v613
    %v619 = vmul.f32 %v566, %v618
    %v620 = vrcp.pop %v586
    %v621 = vmul.f32 %v586, %v620
    %v622 = vsub.f32 1.0, %v621
    %v623 = vmul.f32 %v620, %v622
    %v624 = vadd.f32 %v620, %v623
    %vm625 = vweird.f32 %v586
    %vm626 = vweird.f32 %v620
    %vm627 = vmor %vm625, %vm626
    %v628 = vsel %vm627, %v620, %v624
    %v629 = vand.u32 2147483647, %v586
    %vm630 = vcmp.eq.f32.partialorder %v629, 8.507059e+37
    %v631 = vand.u32 %v586, 2147483648
    %v632 = vor.u32 1.1754944e-38, %v631
    %v633 = vsel %vm630, %v632, %v628
    %v634 = vmul.f32 %v568, %v633
    %v635 = vrcp.pop %v589
    %v636 = vmul.f32 %v589, %v635
    %v637 = vsub.f32 1.0, %v636
    %v638 = vmul.f32 %v635, %v637
    %v639 = vadd.f32 %v635, %v638
    %vm640 = vweird.f32 %v589
    %vm641 = vweird.f32 %v635
    %vm642 = vmor %vm640, %vm641
    %v643 = vsel %vm642, %v635, %v639
    %v644 = vand.u32 2147483647, %v589
    %vm645 = vcmp.eq.f32.partialorder %v644, 8.507059e+37
    %v646 = vand.u32 %v589, 2147483648
    %v647 = vor.u32 1.1754944e-38, %v646
    %v648 = vsel %vm645, %v647, %v643
    %v649 = vmul.f32 %v570, %v648
    %v650 = vrcp.pop %v592
    %v651 = vmul.f32 %v592, %v650
    %v652 = vsub.f32 1.0, %v651
    %v653 = vmul.f32 %v650, %v652
    %v654 = vadd.f32 %v650, %v653
    %vm655 = vweird.f32 %v592
    %vm656 = vweird.f32 %v650
    %vm657 = vmor %vm655, %vm656
    %v658 = vsel %vm657, %v650, %v654
    %v659 = vand.u32 2147483647, %v592
    %vm660 = vcmp.eq.f32.partialorder %v659, 8.507059e+37
    %v661 = vand.u32 %v592, 2147483648
    %v662 = vor.u32 1.1754944e-38, %v661
    %v663 = vsel %vm660, %v662, %v658
    %v664 = vmul.f32 %v572, %v663
    %v665 = vrcp.pop %v595
    %v666 = vmul.f32 %v595, %v665
    %v667 = vsub.f32 1.0, %v666
    %v668 = vmul.f32 %v665, %v667
    %v669 = vadd.f32 %v665, %v668
    %vm670 = vweird.f32 %v595
    %vm671 = vweird.f32 %v665
    %vm672 = vmor %vm670, %vm671
    %v673 = vsel %vm672, %v665, %v669
    %v674 = vand.u32 2147483647, %v595
    %vm675 = vcmp.eq.f32.partialorder %v674, 8.507059e+37
    %v676 = vand.u32 %v595, 2147483648
    %v677 = vor.u32 1.1754944e-38, %v676
    %v678 = vsel %vm675, %v677, %v673
    %v679 = vmul.f32 %v574, %v678
    %v680 = vrcp.pop %v598
    %v681 = vmul.f32 %v598, %v680
    %v682 = vsub.f32 1.0, %v681
    %v683 = vmul.f32 %v680, %v682
    %v684 = vadd.f32 %v680, %v683
    %vm685 = vweird.f32 %v598
    %vm686 = vweird.f32 %v680
    %vm687 = vmor %vm685, %vm686
    %v688 = vsel %vm687, %v680, %v684
    %v689 = vand.u32 2147483647, %v598
    %vm690 = vcmp.eq.f32.partialorder %v689, 8.507059e+37
    %v691 = vand.u32 %v598, 2147483648
    %v692 = vor.u32 1.1754944e-38, %v691
    %v693 = vsel %vm690, %v692, %v688
    %v694 = vmul.f32 %v576, %v693
    %v695 = vrcp.pop %v601
    %v696 = vmul.f32 %v601, %v695
    %v697 = vsub.f32 1.0, %v696
    %v698 = vmul.f32 %v695, %v697
    %v699 = vadd.f32 %v695, %v698
    %vm700 = vweird.f32 %v601
    %vm701 = vweird.f32 %v695
    %vm702 = vmor %vm700, %vm701
    %v703 = vsel %vm702, %v695, %v699
    %v704 = vand.u32 2147483647, %v601
    %vm705 = vcmp.eq.f32.partialorder %v704, 8.507059e+37
    %v706 = vand.u32 %v601, 2147483648
    %v707 = vor.u32 1.1754944e-38, %v706
    %v708 = vsel %vm705, %v707, %v703
    %v709 = vmul.f32 %v578, %v708
    %v710 = vrcp.pop %v604
    %v711 = vmul.f32 %v604, %v710
    %v712 = vsub.f32 1.0, %v711
    %v713 = vmul.f32 %v710, %v712
    %v714 = vadd.f32 %v710, %v713
    %vm715 = vweird.f32 %v604
    %vm716 = vweird.f32 %v710
    %vm717 = vmor %vm715, %vm716
    %v718 = vsel %vm717, %v710, %v714
    %v719 = vand.u32 2147483647, %v604
    %vm720 = vcmp.eq.f32.partialorder %v719, 8.507059e+37
    %v721 = vand.u32 %v604, 2147483648
    %v722 = vor.u32 1.1754944e-38, %v721
    %v723 = vsel %vm720, %v722, %v718
    %v724 = vmul.f32 %v580, %v723
    %v726 = vsel %vm340, %v619, 0
    %728 = vmatpush.msra.mxu0 0.0
    %729 = vmatpush.msra.mxu0 0.0
    %730 = vmatpush.msra.mxu0 0.0
    %731 = vmatpush.msra.mxu0 0.0
    %732 = vmatpush.msra.mxu0 0.0
    %733 = vmatpush.msra.mxu0 0.0
    %734 = vmatpush.msra.mxu0 0.0
    %735 = vmatpush.msra.mxu0 0.0
    %736 = vmatpush.msra.mxu0 0.0
    %737 = vmatpush.msra.mxu0 0.0
    %738 = vmatpush.msra.mxu0 0.0
    %739 = vmatpush.msra.mxu0 0.0
    %740 = vmatpush.msra.mxu0 0.0
    %741 = vmatpush.msra.mxu0 0.0
    %742 = vmatpush.msra.mxu0 0.0
    %743 = vmatpush.msra.mxu0 %v283
    %744 = vmatmul.f32.gmra.mxu0 %v726
    %v745 = vpop.f32.mrf.mxu0
    %v746 = vadd.f32 0.0, %v745
    %747 = vdwg.mxu0
    %v749 = vsel %vm340, %v634, 0
    %751 = vmatpush.msra.mxu0 0.0
    %752 = vmatpush.msra.mxu0 0.0
    %753 = vmatpush.msra.mxu0 0.0
    %754 = vmatpush.msra.mxu0 0.0
    %755 = vmatpush.msra.mxu0 0.0
    %756 = vmatpush.msra.mxu0 0.0
    %757 = vmatpush.msra.mxu0 0.0
    %758 = vmatpush.msra.mxu0 0.0
    %759 = vmatpush.msra.mxu0 0.0
    %760 = vmatpush.msra.mxu0 0.0
    %761 = vmatpush.msra.mxu0 0.0
    %762 = vmatpush.msra.mxu0 0.0
    %763 = vmatpush.msra.mxu0 0.0
    %764 = vmatpush.msra.mxu0 0.0
    %765 = vmatpush.msra.mxu0 0.0
    %766 = vmatpush.msra.mxu0 %v286
    %767 = vmatmul.f32.gmra.mxu0 %v749
    %v768 = vpop.f32.mrf.mxu0
    %v769 = vadd.f32 0.0, %v768
    %770 = vdwg.mxu0
    %v772 = vsel %vm340, %v649, 0
    %774 = vmatpush.msra.mxu0 0.0
    %775 = vmatpush.msra.mxu0 0.0
    %776 = vmatpush.msra.mxu0 0.0
    %777 = vmatpush.msra.mxu0 0.0
    %778 = vmatpush.msra.mxu0 0.0
    %779 = vmatpush.msra.mxu0 0.0
    %780 = vmatpush.msra.mxu0 0.0
    %781 = vmatpush.msra.mxu0 0.0
    %782 = vmatpush.msra.mxu0 0.0
    %783 = vmatpush.msra.mxu0 0.0
    %784 = vmatpush.msra.mxu0 0.0
    %785 = vmatpush.msra.mxu0 0.0
    %786 = vmatpush.msra.mxu0 0.0
    %787 = vmatpush.msra.mxu0 0.0
    %788 = vmatpush.msra.mxu0 0.0
    %789 = vmatpush.msra.mxu0 %v319
    %790 = vmatmul.f32.gmra.mxu0 %v772
    %v791 = vpop.f32.mrf.mxu0
    %v792 = vadd.f32 0.0, %v791
    %793 = vdwg.mxu0
    %v795 = vsel %vm340, %v664, 0
    %797 = vmatpush.msra.mxu0 0.0
    %798 = vmatpush.msra.mxu0 0.0
    %799 = vmatpush.msra.mxu0 0.0
    %800 = vmatpush.msra.mxu0 0.0
    %801 = vmatpush.msra.mxu0 0.0
    %802 = vmatpush.msra.mxu0 0.0
    %803 = vmatpush.msra.mxu0 0.0
    %804 = vmatpush.msra.mxu0 0.0
    %805 = vmatpush.msra.mxu0 0.0
    %806 = vmatpush.msra.mxu0 0.0
    %807 = vmatpush.msra.mxu0 0.0
    %808 = vmatpush.msra.mxu0 0.0
    %809 = vmatpush.msra.mxu0 0.0
    %810 = vmatpush.msra.mxu0 0.0
    %811 = vmatpush.msra.mxu0 0.0
    %812 = vmatpush.msra.mxu0 %v321
    %813 = vmatmul.f32.gmra.mxu0 %v795
    %v814 = vpop.f32.mrf.mxu0
    %v815 = vadd.f32 0.0, %v814
    %816 = vdwg.mxu0
    %v818 = vsel %vm340, %v679, 0
    %820 = vmatpush.msra.mxu0 0.0
    %821 = vmatpush.msra.mxu0 0.0
    %822 = vmatpush.msra.mxu0 0.0
    %823 = vmatpush.msra.mxu0 0.0
    %824 = vmatpush.msra.mxu0 0.0
    %825 = vmatpush.msra.mxu0 0.0
    %826 = vmatpush.msra.mxu0 0.0
    %827 = vmatpush.msra.mxu0 0.0
    %828 = vmatpush.msra.mxu0 0.0
    %829 = vmatpush.msra.mxu0 0.0
    %830 = vmatpush.msra.mxu0 0.0
    %831 = vmatpush.msra.mxu0 0.0
    %832 = vmatpush.msra.mxu0 0.0
    %833 = vmatpush.msra.mxu0 0.0
    %834 = vmatpush.msra.mxu0 0.0
    %835 = vmatpush.msra.mxu0 %v325
    %836 = vmatmul.f32.gmra.mxu0 %v818
    %v837 = vpop.f32.mrf.mxu0
    %v838 = vadd.f32 0.0, %v837
    %839 = vdwg.mxu0
    %v841 = vsel %vm340, %v694, 0
    %843 = vmatpush.msra.mxu0 0.0
    %844 = vmatpush.msra.mxu0 0.0
    %845 = vmatpush.msra.mxu0 0.0
    %846 = vmatpush.msra.mxu0 0.0
    %847 = vmatpush.msra.mxu0 0.0
    %848 = vmatpush.msra.mxu0 0.0
    %849 = vmatpush.msra.mxu0 0.0
    %850 = vmatpush.msra.mxu0 0.0
    %851 = vmatpush.msra.mxu0 0.0
    %852 = vmatpush.msra.mxu0 0.0
    %853 = vmatpush.msra.mxu0 0.0
    %854 = vmatpush.msra.mxu0 0.0
    %855 = vmatpush.msra.mxu0 0.0
    %856 = vmatpush.msra.mxu0 0.0
    %857 = vmatpush.msra.mxu0 0.0
    %858 = vmatpush.msra.mxu0 %v327
    %859 = vmatmul.f32.gmra.mxu0 %v841
    %v860 = vpop.f32.mrf.mxu0
    %v861 = vadd.f32 0.0, %v860
    %862 = vdwg.mxu0
    %v864 = vsel %vm340, %v709, 0
    %866 = vmatpush.msra.mxu0 0.0
    %867 = vmatpush.msra.mxu0 0.0
    %868 = vmatpush.msra.mxu0 0.0
    %869 = vmatpush.msra.mxu0 0.0
    %870 = vmatpush.msra.mxu0 0.0
    %871 = vmatpush.msra.mxu0 0.0
    %872 = vmatpush.msra.mxu0 0.0
    %873 = vmatpush.msra.mxu0 0.0
    %874 = vmatpush.msra.mxu0 0.0
    %875 = vmatpush.msra.mxu0 0.0
    %876 = vmatpush.msra.mxu0 0.0
    %877 = vmatpush.msra.mxu0 0.0
    %878 = vmatpush.msra.mxu0 0.0
    %879 = vmatpush.msra.mxu0 0.0
    %880 = vmatpush.msra.mxu0 0.0
    %881 = vmatpush.msra.mxu0 %v331
    %882 = vmatmul.f32.gmra.mxu0 %v864
    %v883 = vpop.f32.mrf.mxu0
    %v884 = vadd.f32 0.0, %v883
    %885 = vdwg.mxu0
    %v887 = vsel %vm340, %v724, 0
    %889 = vmatpush.msra.mxu0 0.0
    %890 = vmatpush.msra.mxu0 0.0
    %891 = vmatpush.msra.mxu0 0.0
    %892 = vmatpush.msra.mxu0 0.0
    %893 = vmatpush.msra.mxu0 0.0
    %894 = vmatpush.msra.mxu0 0.0
    %895 = vmatpush.msra.mxu0 0.0
    %896 = vmatpush.msra.mxu0 0.0
    %897 = vmatpush.msra.mxu0 0.0
    %898 = vmatpush.msra.mxu0 0.0
    %899 = vmatpush.msra.mxu0 0.0
    %900 = vmatpush.msra.mxu0 0.0
    %901 = vmatpush.msra.mxu0 0.0
    %902 = vmatpush.msra.mxu0 0.0
    %903 = vmatpush.msra.mxu0 0.0
    %904 = vmatpush.msra.mxu0 %v333
    %905 = vmatmul.f32.gmra.mxu0 %v887
    %v906 = vpop.f32.mrf.mxu0
    %v907 = vadd.f32 0.0, %v906
    %908 = vdwg.mxu0
    %911 = vrot.lane.b32.xlu0 %v792, 8
    %v912 = vpop.permute.xlu0 %911
    %913 = vrot.lane.b32.xlu0 %v815, 8
    %v914 = vpop.permute.xlu0 %913
    %919 = vrot.lane.b32.xlu0 %v838, 16
    %v920 = vpop.permute.xlu0 %919
    %921 = vrot.lane.b32.xlu0 %v861, 16
    %v922 = vpop.permute.xlu0 %921
    %927 = vrot.lane.b32.xlu0 %v884, 24
    %v928 = vpop.permute.xlu0 %927
    %929 = vrot.lane.b32.xlu0 %v907, 24
    %v930 = vpop.permute.xlu0 %929
    %v933 = vsel %vm340, %v746, %v912
    %v934 = vsel %vm340, %v769, %v914
    %v935 = vsel %vm151, %v933, %v920
    %v936 = vsel %vm151, %v934, %v922
    %vm937 = vcmask 195584
    %v938 = vsel %vm937, %v935, %v928
    %v939 = vsel %vm937, %v936, %v930
    %v940 = vld [vmem:[#allocation3] sm:$0xff]
    %v941 = vld [vmem:[#allocation3 + $0x8] sm:$0xff]
    %v942 = vld [vmem:[#allocation3 + $0x10] sm:$0xff]
    %v943 = vld [vmem:[#allocation3 + $0x18] sm:$0xff]
    %v944 = vld [vmem:[%s10] sm:$0x1]
    %v946 = vperm.slane %v944, 0
    %v949 = vsel %vm194, %v938, 0
    %v952 = vsel %vm194, %v939, 0
    %954 = vmatpush.msra.mxu0 0.0
    %955 = vmatpush.msra.mxu0 0.0
    %956 = vmatpush.msra.mxu0 0.0
    %957 = vmatpush.msra.mxu0 0.0
    %958 = vmatpush.msra.mxu0 0.0
    %959 = vmatpush.msra.mxu0 0.0
    %960 = vmatpush.msra.mxu0 0.0
    %961 = vmatpush.msra.mxu0 0.0
    %962 = vmatpush.msra.mxu0 0.0
    %963 = vmatpush.msra.mxu0 0.0
    %964 = vmatpush.msra.mxu0 0.0
    %965 = vmatpush.msra.mxu0 0.0
    %966 = vmatpush.msra.mxu0 %v943
    %967 = vmatpush.msra.mxu0 %v942
    %968 = vmatpush.msra.mxu0 %v941
    %969 = vmatpush.msra.mxu0 %v940
    %970 = vmatmul.f32.gmra.mxu0 %v949
    %v971 = vpop.f32.mrf.mxu0
    %v972 = vadd.f32 %v946, %v971
    %973 = vmatmul.f32.gmra.mxu0 %v952
    %v974 = vpop.f32.mrf.mxu0
    %v975 = vadd.f32 %v946, %v974
    %976 = vdwg.mxu0
    %v977 = vadd.f32 %v176, %v972
    %v978 = vadd.f32 %v179, %v975
    %v979 = vld [vmem:[%s11] sm:$0x1]
    %v980 = vld [vmem:[#allocation5] sm:$0x1]
    %v981 = vsel %vm194, %v977, 0.0
    %982 = vadd.xlane.f32.xlu0 %v981
    %v983 = vpop.xlane.xlu0 %982
    %v984 = vsel %vm194, %v978, 0.0
    %985 = vadd.xlane.f32.xlu0 %v984
    %v986 = vpop.xlane.xlu0 %985
    %v987 = vrcp.pop 32.0
    %v988 = vmul.f32 32.0, %v987
    %v989 = vsub.f32 1.0, %v988
    %v990 = vmul.f32 %v987, %v989
    %v991 = vadd.f32 %v987, %v990
    %vm992 = vweird.f32 %v987
    %v993 = vsel %vm992, %v987, %v991
    %v994 = vmul.f32 %v983, %v993
    %v995 = vmul.f32 %v986, %v993
    %v996 = vsub.f32 %v977, %v994
    %v997 = vsub.f32 %v978, %v995
    %v998 = vmul.f32 %v996, %v996
    %v999 = vmul.f32 %v997, %v997
    %v1000 = vsel %vm194, %v998, 0.0
    %1001 = vadd.xlane.f32.xlu0 %v1000
    %v1002 = vpop.xlane.xlu0 %1001
    %v1003 = vsel %vm194, %v999, 0.0
    %1004 = vadd.xlane.f32.xlu0 %v1003
    %v1005 = vpop.xlane.xlu0 %1004
    %v1006 = vmul.f32 %v1002, %v993
    %v1007 = vmul.f32 %v1005, %v993
    %v1008 = vadd.f32 %v1006, 1e-05
    %v1009 = vadd.f32 %v1007, 1e-05
    %v1010 = vrsqrt.pop %v1008
    %v1011 = vmul.f32 %v1010, %v1008
    %v1012 = vmul.f32 %v1011, %v1010
    %v1013 = vmul.f32 0.5, %v1012
    %v1014 = vsub.f32 1.5, %v1013
    %v1015 = vmul.f32 %v1010, %v1014
    %vm1016 = vweird.f32 %v1008
    %vm1017 = vweird.f32 %v1010
    %vm1018 = vmor %vm1016, %vm1017
    %v1019 = vsel %vm1018, %v1010, %v1015
    %v1020 = vrsqrt.pop %v1009
    %v1021 = vmul.f32 %v1020, %v1009
    %v1022 = vmul.f32 %v1021, %v1020
    %v1023 = vmul.f32 0.5, %v1022
    %v1024 = vsub.f32 1.5, %v1023
    %v1025 = vmul.f32 %v1020, %v1024
    %vm1026 = vweird.f32 %v1009
    %vm1027 = vweird.f32 %v1020
    %vm1028 = vmor %vm1026, %vm1027
    %v1029 = vsel %vm1028, %v1020, %v1025
    %v1030 = vmul.f32 %v996, %v1019
    %v1031 = vmul.f32 %v997, %v1029
    %v1033 = vperm.slane %v979, 0
    %v1035 = vmul.f32 %v1030, %v1033
    %v1036 = vmul.f32 %v1031, %v1033
    %v1038 = vperm.slane %v980, 0
    %v1040 = vadd.f32 %v1035, %v1038
    %v1041 = vadd.f32 %v1036, %v1038
    %v1042 = vld [vmem:[#allocation7] sm:$0xff]
    %v1043 = vld [vmem:[#allocation7 + $0x8] sm:$0xff]
    %v1044 = vld [vmem:[#allocation7 + $0x10] sm:$0xff]
    %v1045 = vld [vmem:[#allocation7 + $0x18] sm:$0xff]
    %v1046 = vld [vmem:[%s14] sm:$0x1]
    %v1048 = vperm.slane %v1046, 0
    %v1051 = vsel %vm194, %v1040, 0
    %v1054 = vsel %vm194, %v1041, 0
    %1056 = vmatpush.msra.mxu0 0.0
    %1057 = vmatpush.msra.mxu0 0.0
    %1058 = vmatpush.msra.mxu0 0.0
    %1059 = vmatpush.msra.mxu0 0.0
    %1060 = vmatpush.msra.mxu0 0.0
    %1061 = vmatpush.msra.mxu0 0.0
    %1062 = vmatpush.msra.mxu0 0.0
    %1063 = vmatpush.msra.mxu0 0.0
    %1064 = vmatpush.msra.mxu0 0.0
    %1065 = vmatpush.msra.mxu0 0.0
    %1066 = vmatpush.msra.mxu0 0.0
    %1067 = vmatpush.msra.mxu0 0.0
    %1068 = vmatpush.msra.mxu0 %v1045
    %1069 = vmatpush.msra.mxu0 %v1044
    %1070 = vmatpush.msra.mxu0 %v1043
    %1071 = vmatpush.msra.mxu0 %v1042
    %1072 = vmatmul.f32.gmra.mxu0 %v1051
    %v1073 = vpop.f32.mrf.mxu0
    %v1074 = vadd.f32 %v1048, %v1073
    %1075 = vmatmul.f32.gmra.mxu0 %v1054
    %v1076 = vpop.f32.mrf.mxu0
    %v1077 = vadd.f32 %v1048, %v1076
    %1078 = vdwg.mxu0
    %v1079 = vmax.f32 %v1074, 0.0
    %v1080 = vmax.f32 %v1077, 0.0
    %v1081 = vld [vmem:[%s15] sm:$0xff]
    %v1082 = vld [vmem:[%s15 + $0x8] sm:$0xff]
    %v1083 = vld [vmem:[%s15 + $0x10] sm:$0xff]
    %v1084 = vld [vmem:[%s15 + $0x18] sm:$0xff]
    %v1085 = vld [vmem:[%s15 + $0x20] sm:$0xff]
    %v1086 = vld [vmem:[%s15 + $0x28] sm:$0xff]
    %v1087 = vld [vmem:[%s15 + $0x30] sm:$0xff]
    %v1088 = vld [vmem:[%s15 + $0x38] sm:$0xff]
    %v1089 = vld [vmem:[%s16] sm:$0x1]
    %v1091 = vperm.slane %v1089, 0
    %vm1093 = vcmask 523264
    %v1095 = vsel %vm1093, %v1079, 0
    %v1098 = vsel %vm1093, %v1080, 0
    %1100 = vmatpush.msra.mxu0 0.0
    %1101 = vmatpush.msra.mxu0 0.0
    %1102 = vmatpush.msra.mxu0 0.0
    %1103 = vmatpush.msra.mxu0 0.0
    %1104 = vmatpush.msra.mxu0 0.0
    %1105 = vmatpush.msra.mxu0 0.0
    %1106 = vmatpush.msra.mxu0 0.0
    %1107 = vmatpush.msra.mxu0 0.0
    %1108 = vmatpush.msra.mxu0 %v1088
    %1109 = vmatpush.msra.mxu0 %v1087
    %1110 = vmatpush.msra.mxu0 %v1086
    %1111 = vmatpush.msra.mxu0 %v1085
    %1112 = vmatpush.msra.mxu0 %v1084
    %1113 = vmatpush.msra.mxu0 %v1083
    %1114 = vmatpush.msra.mxu0 %v1082
    %1115 = vmatpush.msra.mxu0 %v1081
    %1116 = vmatmul.f32.gmra.mxu0 %v1095
    %v1117 = vpop.f32.mrf.mxu0
    %v1118 = vadd.f32 %v1091, %v1117
    %1119 = vmatmul.f32.gmra.mxu0 %v1098
    %v1120 = vpop.f32.mrf.mxu0
    %v1121 = vadd.f32 %v1091, %v1120
    %1122 = vdwg.mxu0
    %v1123 = vadd.f32 %v1040, %v1118
    %v1124 = vadd.f32 %v1041, %v1121
    %v1125 = vld [vmem:[%s17] sm:$0x1]
    %v1126 = vld [vmem:[#allocation8] sm:$0x1]
    %v1127 = vsel %vm194, %v1123, 0.0
    %1128 = vadd.xlane.f32.xlu0 %v1127
    %v1129 = vpop.xlane.xlu0 %1128
    %v1130 = vsel %vm194, %v1124, 0.0
    %1131 = vadd.xlane.f32.xlu0 %v1130
    %v1132 = vpop.xlane.xlu0 %1131
    %v1133 = vmul.f32 %v1129, %v993
    %v1134 = vmul.f32 %v1132, %v993
    %v1135 = vsub.f32 %v1123, %v1133
    %v1136 = vsub.f32 %v1124, %v1134
    %v1137 = vmul.f32 %v1135, %v1135
    %v1138 = vmul.f32 %v1136, %v1136
    %v1139 = vsel %vm194, %v1137, 0.0
    %1140 = vadd.xlane.f32.xlu0 %v1139
    %v1141 = vpop.xlane.xlu0 %1140
    %v1142 = vsel %vm194, %v1138, 0.0
    %1143 = vadd.xlane.f32.xlu0 %v1142
    %v1144 = vpop.xlane.xlu0 %1143
    %v1145 = vmul.f32 %v1141, %v993
    %v1146 = vmul.f32 %v1144, %v993
    %v1147 = vadd.f32 %v1145, 1e-05
    %v1148 = vadd.f32 %v1146, 1e-05
    %v1149 = vrsqrt.pop %v1147
    %v1150 = vmul.f32 %v1149, %v1147
    %v1151 = vmul.f32 %v1150, %v1149
    %v1152 = vmul.f32 0.5, %v1151
    %v1153 = vsub.f32 1.5, %v1152
    %v1154 = vmul.f32 %v1149, %v1153
    %vm1155 = vweird.f32 %v1147
    %vm1156 = vweird.f32 %v1149
    %vm1157 = vmor %vm1155, %vm1156
    %v1158 = vsel %vm1157, %v1149, %v1154
    %v1159 = vrsqrt.pop %v1148
    %v1160 = vmul.f32 %v1159, %v1148
    %v1161 = vmul.f32 %v1160, %v1159
    %v1162 = vmul.f32 0.5, %v1161
    %v1163 = vsub.f32 1.5, %v1162
    %v1164 = vmul.f32 %v1159, %v1163
    %vm1165 = vweird.f32 %v1148
    %vm1166 = vweird.f32 %v1159
    %vm1167 = vmor %vm1165, %vm1166
    %v1168 = vsel %vm1167, %v1159, %v1164
    %v1169 = vmul.f32 %v1135, %v1158
    %v1170 = vmul.f32 %v1136, %v1168
    %v1172 = vperm.slane %v1125, 0
    %v1174 = vmul.f32 %v1169, %v1172
    %v1175 = vmul.f32 %v1170, %v1172
    %v1177 = vperm.slane %v1126, 0
    %v1179 = vadd.f32 %v1174, %v1177
    %v1180 = vadd.f32 %v1175, %v1177
    %s1181 = scalar_lea.vmem %s3, 32
    %v1182 = vld [vmem:[%s1181] sm:$0xff]
    %v1183 = vld [vmem:[%s1181 + $0x8] sm:$0xff]
    %v1184 = vld [vmem:[%s1181 + $0x10] sm:$0xff]
    %v1185 = vld [vmem:[%s1181 + $0x18] sm:$0xff]
    %s1186 = scalar_lea.vmem %s4, 1
    %v1187 = vld [vmem:[%s1186] sm:$0x1]
    %v1189 = vperm.slane %v1187, 0
    %v1192 = vsel %vm194, %v1179, 0
    %v1195 = vsel %vm194, %v1180, 0
    %1197 = vmatpush.msra.mxu0 0.0
    %1198 = vmatpush.msra.mxu0 0.0
    %1199 = vmatpush.msra.mxu0 0.0
    %1200 = vmatpush.msra.mxu0 0.0
    %1201 = vmatpush.msra.mxu0 0.0
    %1202 = vmatpush.msra.mxu0 0.0
    %1203 = vmatpush.msra.mxu0 0.0
    %1204 = vmatpush.msra.mxu0 0.0
    %1205 = vmatpush.msra.mxu0 0.0
    %1206 = vmatpush.msra.mxu0 0.0
    %1207 = vmatpush.msra.mxu0 0.0
    %1208 = vmatpush.msra.mxu0 0.0
    %1209 = vmatpush.msra.mxu0 %v1185
    %1210 = vmatpush.msra.mxu0 %v1184
    %1211 = vmatpush.msra.mxu0 %v1183
    %1212 = vmatpush.msra.mxu0 %v1182
    %1213 = vmatmul.f32.gmra.mxu0 %v1192
    %v1214 = vpop.f32.mrf.mxu0
    %v1215 = vadd.f32 %v1189, %v1214
    %1216 = vmatmul.f32.gmra.mxu0 %v1195
    %v1217 = vpop.f32.mrf.mxu0
    %v1218 = vadd.f32 %v1189, %v1217
    %1219 = vdwg.mxu0
    %v1220 = vmul.f32 %v1215, 0.35355338
    %v1221 = vmul.f32 %v1218, 0.35355338
    %s1222 = scalar_lea.vmem %s5, 32
    %v1223 = vld [vmem:[%s1222] sm:$0xff]
    %v1224 = vld [vmem:[%s1222 + $0x8] sm:$0xff]
    %v1225 = vld [vmem:[%s1222 + $0x10] sm:$0xff]
    %v1226 = vld [vmem:[%s1222 + $0x18] sm:$0xff]
    %s1227 = scalar_lea.vmem %s6, 1
    %v1228 = vld [vmem:[%s1227] sm:$0x1]
    %v1230 = vperm.slane %v1228, 0
    %1232 = vmatpush.msra.mxu0 0.0
    %1233 = vmatpush.msra.mxu0 0.0
    %1234 = vmatpush.msra.mxu0 0.0
    %1235 = vmatpush.msra.mxu0 0.0
    %1236 = vmatpush.msra.mxu0 0.0
    %1237 = vmatpush.msra.mxu0 0.0
    %1238 = vmatpush.msra.mxu0 0.0
    %1239 = vmatpush.msra.mxu0 0.0
    %1240 = vmatpush.msra.mxu0 0.0
    %1241 = vmatpush.msra.mxu0 0.0
    %1242 = vmatpush.msra.mxu0 0.0
    %1243 = vmatpush.msra.mxu0 0.0
    %1244 = vmatpush.msra.mxu0 %v1226
    %1245 = vmatpush.msra.mxu0 %v1225
    %1246 = vmatpush.msra.mxu0 %v1224
    %1247 = vmatpush.msra.mxu0 %v1223
    %1248 = vmatmul.f32.gmra.mxu0 %v1192
    %v1249 = vpop.f32.mrf.mxu0
    %v1250 = vadd.f32 %v1230, %v1249
    %1251 = vmatmul.f32.gmra.mxu0 %v1195
    %v1252 = vpop.f32.mrf.mxu0
    %v1253 = vadd.f32 %v1230, %v1252
    %1254 = vdwg.mxu0
    %s1255 = scalar_lea.vmem %s7, 32
    %v1256 = vld [vmem:[%s1255] sm:$0xff]
    %v1257 = vld [vmem:[%s1255 + $0x8] sm:$0xff]
    %v1258 = vld [vmem:[%s1255 + $0x10] sm:$0xff]
    %v1259 = vld [vmem:[%s1255 + $0x18] sm:$0xff]
    %s1260 = scalar_lea.vmem %s8, 1
    %v1261 = vld [vmem:[%s1260] sm:$0x1]
    %v1263 = vperm.slane %v1261, 0
    %1265 = vmatpush.msra.mxu0 0.0
    %1266 = vmatpush.msra.mxu0 0.0
    %1267 = vmatpush.msra.mxu0 0.0
    %1268 = vmatpush.msra.mxu0 0.0
    %1269 = vmatpush.msra.mxu0 0.0
    %1270 = vmatpush.msra.mxu0 0.0
    %1271 = vmatpush.msra.mxu0 0.0
    %1272 = vmatpush.msra.mxu0 0.0
    %1273 = vmatpush.msra.mxu0 0.0
    %1274 = vmatpush.msra.mxu0 0.0
    %1275 = vmatpush.msra.mxu0 0.0
    %1276 = vmatpush.msra.mxu0 0.0
    %1277 = vmatpush.msra.mxu0 %v1259
    %1278 = vmatpush.msra.mxu0 %v1258
    %1279 = vmatpush.msra.mxu0 %v1257
    %1280 = vmatpush.msra.mxu0 %v1256
    %1281 = vmatmul.f32.gmra.mxu0 %v1192
    %v1282 = vpop.f32.mrf.mxu0
    %v1283 = vadd.f32 %v1263, %v1282
    %1284 = vmatmul.f32.gmra.mxu0 %v1195
    %v1285 = vpop.f32.mrf.mxu0
    %v1286 = vadd.f32 %v1263, %v1285
    %1287 = vdwg.mxu0
    %1290 = vrot.lane.b32.xlu0 %v1220, 120
    %v1291 = vpop.permute.xlu0 %1290
    %1292 = vrot.lane.b32.xlu0 %v1221, 120
    %v1293 = vpop.permute.xlu0 %1292
    %1294 = vrot.lane.b32.xlu0 %v1220, 112
    %v1295 = vpop.permute.xlu0 %1294
    %1296 = vrot.lane.b32.xlu0 %v1221, 112
    %v1297 = vpop.permute.xlu0 %1296
    %1298 = vrot.lane.b32.xlu0 %v1220, 104
    %v1299 = vpop.permute.xlu0 %1298
    %1300 = vrot.lane.b32.xlu0 %v1221, 104
    %v1301 = vpop.permute.xlu0 %1300
    %1304 = vrot.lane.b32.xlu0 %v1250, 120
    %v1305 = vpop.permute.xlu0 %1304
    %1306 = vrot.lane.b32.xlu0 %v1253, 120
    %v1307 = vpop.permute.xlu0 %1306
    %1308 = vrot.lane.b32.xlu0 %v1250, 112
    %v1309 = vpop.permute.xlu0 %1308
    %1310 = vrot.lane.b32.xlu0 %v1253, 112
    %v1311 = vpop.permute.xlu0 %1310
    %1312 = vrot.lane.b32.xlu0 %v1250, 104
    %v1313 = vpop.permute.xlu0 %1312
    %1314 = vrot.lane.b32.xlu0 %v1253, 104
    %v1315 = vpop.permute.xlu0 %1314
    %1318 = vrot.lane.b32.xlu0 %v1283, 120
    %v1319 = vpop.permute.xlu0 %1318
    %1320 = vrot.lane.b32.xlu0 %v1286, 120
    %v1321 = vpop.permute.xlu0 %1320
    %1324 = vrot.lane.b32.xlu0 %v1283, 112
    %v1325 = vpop.permute.xlu0 %1324
    %1326 = vrot.lane.b32.xlu0 %v1286, 112
    %v1327 = vpop.permute.xlu0 %1326
    %1330 = vrot.lane.b32.xlu0 %v1283, 104
    %v1331 = vpop.permute.xlu0 %1330
    %1332 = vrot.lane.b32.xlu0 %v1286, 104
    %v1333 = vpop.permute.xlu0 %1332
    %v1336 = vsel %vm340, %v1220, 0
    %v1338 = vsel %vm340, %v1250, 0
    %1340 = vmatpush.xpose.msra.mxu0 0.0
    %1341 = vmatpush.xpose.msra.mxu0 0.0
    %1342 = vmatpush.xpose.msra.mxu0 0.0
    %1343 = vmatpush.xpose.msra.mxu0 0.0
    %1344 = vmatpush.xpose.msra.mxu0 0.0
    %1345 = vmatpush.xpose.msra.mxu0 0.0
    %1346 = vmatpush.xpose.msra.mxu0 0.0
    %1347 = vmatpush.xpose.msra.mxu0 0.0
    %1348 = vmatpush.xpose.msra.mxu0 0.0
    %1349 = vmatpush.xpose.msra.mxu0 0.0
    %1350 = vmatpush.xpose.msra.mxu0 0.0
    %1351 = vmatpush.xpose.msra.mxu0 0.0
    %1352 = vmatpush.xpose.msra.mxu0 0.0
    %1353 = vmatpush.xpose.msra.mxu0 0.0
    %1354 = vmatpush.xpose.msra.mxu0 0.0
    %1355 = vmatpush.xpose.msra.mxu0 %v1338
    %1356 = vmatmul.f32.gmra.mxu0 %v1336
    %v1357 = vpop.f32.mrf.mxu0
    %v1358 = vadd.f32 %v336, %v1357
    %1359 = vdwg.mxu0
    %v1360 = vsel %vm340, %v1221, 0
    %v1362 = vsel %vm340, %v1253, 0
    %1364 = vmatpush.xpose.msra.mxu0 0.0
    %1365 = vmatpush.xpose.msra.mxu0 0.0
    %1366 = vmatpush.xpose.msra.mxu0 0.0
    %1367 = vmatpush.xpose.msra.mxu0 0.0
    %1368 = vmatpush.xpose.msra.mxu0 0.0
    %1369 = vmatpush.xpose.msra.mxu0 0.0
    %1370 = vmatpush.xpose.msra.mxu0 0.0
    %1371 = vmatpush.xpose.msra.mxu0 0.0
    %1372 = vmatpush.xpose.msra.mxu0 0.0
    %1373 = vmatpush.xpose.msra.mxu0 0.0
    %1374 = vmatpush.xpose.msra.mxu0 0.0
    %1375 = vmatpush.xpose.msra.mxu0 0.0
    %1376 = vmatpush.xpose.msra.mxu0 0.0
    %1377 = vmatpush.xpose.msra.mxu0 0.0
    %1378 = vmatpush.xpose.msra.mxu0 0.0
    %1379 = vmatpush.xpose.msra.mxu0 %v1362
    %1380 = vmatmul.f32.gmra.mxu0 %v1360
    %v1381 = vpop.f32.mrf.mxu0
    %v1382 = vadd.f32 %v337, %v1381
    %1383 = vdwg.mxu0
    %v1384 = vsel %vm340, %v1291, 0
    %v1386 = vsel %vm340, %v1305, 0
    %1388 = vmatpush.xpose.msra.mxu0 0.0
    %1389 = vmatpush.xpose.msra.mxu0 0.0
    %1390 = vmatpush.xpose.msra.mxu0 0.0
    %1391 = vmatpush.xpose.msra.mxu0 0.0
    %1392 = vmatpush.xpose.msra.mxu0 0.0
    %1393 = vmatpush.xpose.msra.mxu0 0.0
    %1394 = vmatpush.xpose.msra.mxu0 0.0
    %1395 = vmatpush.xpose.msra.mxu0 0.0
    %1396 = vmatpush.xpose.msra.mxu0 0.0
    %1397 = vmatpush.xpose.msra.mxu0 0.0
    %1398 = vmatpush.xpose.msra.mxu0 0.0
    %1399 = vmatpush.xpose.msra.mxu0 0.0
    %1400 = vmatpush.xpose.msra.mxu0 0.0
    %1401 = vmatpush.xpose.msra.mxu0 0.0
    %1402 = vmatpush.xpose.msra.mxu0 0.0
    %1403 = vmatpush.xpose.msra.mxu0 %v1386
    %1404 = vmatmul.f32.gmra.mxu0 %v1384
    %v1405 = vpop.f32.mrf.mxu0
    %v1406 = vadd.f32 %v336, %v1405
    %1407 = vdwg.mxu0
    %v1408 = vsel %vm340, %v1293, 0
    %v1410 = vsel %vm340, %v1307, 0
    %1412 = vmatpush.xpose.msra.mxu0 0.0
    %1413 = vmatpush.xpose.msra.mxu0 0.0
    %1414 = vmatpush.xpose.msra.mxu0 0.0
    %1415 = vmatpush.xpose.msra.mxu0 0.0
    %1416 = vmatpush.xpose.msra.mxu0 0.0
    %1417 = vmatpush.xpose.msra.mxu0 0.0
    %1418 = vmatpush.xpose.msra.mxu0 0.0
    %1419 = vmatpush.xpose.msra.mxu0 0.0
    %1420 = vmatpush.xpose.msra.mxu0 0.0
    %1421 = vmatpush.xpose.msra.mxu0 0.0
    %1422 = vmatpush.xpose.msra.mxu0 0.0
    %1423 = vmatpush.xpose.msra.mxu0 0.0
    %1424 = vmatpush.xpose.msra.mxu0 0.0
    %1425 = vmatpush.xpose.msra.mxu0 0.0
    %1426 = vmatpush.xpose.msra.mxu0 0.0
    %1427 = vmatpush.xpose.msra.mxu0 %v1410
    %1428 = vmatmul.f32.gmra.mxu0 %v1408
    %v1429 = vpop.f32.mrf.mxu0
    %v1430 = vadd.f32 %v337, %v1429
    %1431 = vdwg.mxu0
    %v1432 = vsel %vm340, %v1295, 0
    %v1434 = vsel %vm340, %v1309, 0
    %1436 = vmatpush.xpose.msra.mxu0 0.0
    %1437 = vmatpush.xpose.msra.mxu0 0.0
    %1438 = vmatpush.xpose.msra.mxu0 0.0
    %1439 = vmatpush.xpose.msra.mxu0 0.0
    %1440 = vmatpush.xpose.msra.mxu0 0.0
    %1441 = vmatpush.xpose.msra.mxu0 0.0
    %1442 = vmatpush.xpose.msra.mxu0 0.0
    %1443 = vmatpush.xpose.msra.mxu0 0.0
    %1444 = vmatpush.xpose.msra.mxu0 0.0
    %1445 = vmatpush.xpose.msra.mxu0 0.0
    %1446 = vmatpush.xpose.msra.mxu0 0.0
    %1447 = vmatpush.xpose.msra.mxu0 0.0
    %1448 = vmatpush.xpose.msra.mxu0 0.0
    %1449 = vmatpush.xpose.msra.mxu0 0.0
    %1450 = vmatpush.xpose.msra.mxu0 0.0
    %1451 = vmatpush.xpose.msra.mxu0 %v1434
    %1452 = vmatmul.f32.gmra.mxu0 %v1432
    %v1453 = vpop.f32.mrf.mxu0
    %v1454 = vadd.f32 %v336, %v1453
    %1455 = vdwg.mxu0
    %v1456 = vsel %vm340, %v1297, 0
    %v1458 = vsel %vm340, %v1311, 0
    %1460 = vmatpush.xpose.msra.mxu0 0.0
    %1461 = vmatpush.xpose.msra.mxu0 0.0
    %1462 = vmatpush.xpose.msra.mxu0 0.0
    %1463 = vmatpush.xpose.msra.mxu0 0.0
    %1464 = vmatpush.xpose.msra.mxu0 0.0
    %1465 = vmatpush.xpose.msra.mxu0 0.0
    %1466 = vmatpush.xpose.msra.mxu0 0.0
    %1467 = vmatpush.xpose.msra.mxu0 0.0
    %1468 = vmatpush.xpose.msra.mxu0 0.0
    %1469 = vmatpush.xpose.msra.mxu0 0.0
    %1470 = vmatpush.xpose.msra.mxu0 0.0
    %1471 = vmatpush.xpose.msra.mxu0 0.0
    %1472 = vmatpush.xpose.msra.mxu0 0.0
    %1473 = vmatpush.xpose.msra.mxu0 0.0
    %1474 = vmatpush.xpose.msra.mxu0 0.0
    %1475 = vmatpush.xpose.msra.mxu0 %v1458
    %1476 = vmatmul.f32.gmra.mxu0 %v1456
    %v1477 = vpop.f32.mrf.mxu0
    %v1478 = vadd.f32 %v337, %v1477
    %1479 = vdwg.mxu0
    %v1480 = vsel %vm340, %v1299, 0
    %v1482 = vsel %vm340, %v1313, 0
    %1484 = vmatpush.xpose.msra.mxu0 0.0
    %1485 = vmatpush.xpose.msra.mxu0 0.0
    %1486 = vmatpush.xpose.msra.mxu0 0.0
    %1487 = vmatpush.xpose.msra.mxu0 0.0
    %1488 = vmatpush.xpose.msra.mxu0 0.0
    %1489 = vmatpush.xpose.msra.mxu0 0.0
    %1490 = vmatpush.xpose.msra.mxu0 0.0
    %1491 = vmatpush.xpose.msra.mxu0 0.0
    %1492 = vmatpush.xpose.msra.mxu0 0.0
    %1493 = vmatpush.xpose.msra.mxu0 0.0
    %1494 = vmatpush.xpose.msra.mxu0 0.0
    %1495 = vmatpush.xpose.msra.mxu0 0.0
    %1496 = vmatpush.xpose.msra.mxu0 0.0
    %1497 = vmatpush.xpose.msra.mxu0 0.0
    %1498 = vmatpush.xpose.msra.mxu0 0.0
    %1499 = vmatpush.xpose.msra.mxu0 %v1482
    %1500 = vmatmul.f32.gmra.mxu0 %v1480
    %v1501 = vpop.f32.mrf.mxu0
    %v1502 = vadd.f32 %v336, %v1501
    %1503 = vdwg.mxu0
    %v1504 = vsel %vm340, %v1301, 0
    %v1506 = vsel %vm340, %v1315, 0
    %1508 = vmatpush.xpose.msra.mxu0 0.0
    %1509 = vmatpush.xpose.msra.mxu0 0.0
    %1510 = vmatpush.xpose.msra.mxu0 0.0
    %1511 = vmatpush.xpose.msra.mxu0 0.0
    %1512 = vmatpush.xpose.msra.mxu0 0.0
    %1513 = vmatpush.xpose.msra.mxu0 0.0
    %1514 = vmatpush.xpose.msra.mxu0 0.0
    %1515 = vmatpush.xpose.msra.mxu0 0.0
    %1516 = vmatpush.xpose.msra.mxu0 0.0
    %1517 = vmatpush.xpose.msra.mxu0 0.0
    %1518 = vmatpush.xpose.msra.mxu0 0.0
    %1519 = vmatpush.xpose.msra.mxu0 0.0
    %1520 = vmatpush.xpose.msra.mxu0 0.0
    %1521 = vmatpush.xpose.msra.mxu0 0.0
    %1522 = vmatpush.xpose.msra.mxu0 0.0
    %1523 = vmatpush.xpose.msra.mxu0 %v1506
    %1524 = vmatmul.f32.gmra.mxu0 %v1504
    %v1525 = vpop.f32.mrf.mxu0
    %v1526 = vadd.f32 %v337, %v1525
    %1527 = vdwg.mxu0
    %v1528 = vsel %vm340, %v1358, -inf
    %1529 = vmax.xlane.f32.xlu0 %v1528
    %v1530 = vpop.xlane.xlu0 %1529
    %v1531 = vsel %vm340, %v1382, -inf
    %1532 = vmax.xlane.f32.xlu0 %v1531
    %v1533 = vpop.xlane.xlu0 %1532
    %v1534 = vsel %vm340, %v1406, -inf
    %1535 = vmax.xlane.f32.xlu0 %v1534
    %v1536 = vpop.xlane.xlu0 %1535
    %v1537 = vsel %vm340, %v1430, -inf
    %1538 = vmax.xlane.f32.xlu0 %v1537
    %v1539 = vpop.xlane.xlu0 %1538
    %v1540 = vsel %vm340, %v1454, -inf
    %1541 = vmax.xlane.f32.xlu0 %v1540
    %v1542 = vpop.xlane.xlu0 %1541
    %v1543 = vsel %vm340, %v1478, -inf
    %1544 = vmax.xlane.f32.xlu0 %v1543
    %v1545 = vpop.xlane.xlu0 %1544
    %v1546 = vsel %vm340, %v1502, -inf
    %1547 = vmax.xlane.f32.xlu0 %v1546
    %v1548 = vpop.xlane.xlu0 %1547
    %v1549 = vsel %vm340, %v1526, -inf
    %1550 = vmax.xlane.f32.xlu0 %v1549
    %v1551 = vpop.xlane.xlu0 %1550
    %v1552 = vsub.f32 %v1358, %v1530
    %v1553 = vsub.f32 %v1382, %v1533
    %v1554 = vsub.f32 %v1406, %v1536
    %v1555 = vsub.f32 %v1430, %v1539
    %v1556 = vsub.f32 %v1454, %v1542
    %v1557 = vsub.f32 %v1478, %v1545
    %v1558 = vsub.f32 %v1502, %v1548
    %v1559 = vsub.f32 %v1526, %v1551
    %v1560 = vmul.f32 %v1552, 1.442695
    %v1561 = vpow.pop %v1560
    %v1562 = vmul.f32 %v1553, 1.442695
    %v1563 = vpow.pop %v1562
    %v1564 = vmul.f32 %v1554, 1.442695
    %v1565 = vpow.pop %v1564
    %v1566 = vmul.f32 %v1555, 1.442695
    %v1567 = vpow.pop %v1566
    %v1568 = vmul.f32 %v1556, 1.442695
    %v1569 = vpow.pop %v1568
    %v1570 = vmul.f32 %v1557, 1.442695
    %v1571 = vpow.pop %v1570
    %v1572 = vmul.f32 %v1558, 1.442695
    %v1573 = vpow.pop %v1572
    %v1574 = vmul.f32 %v1559, 1.442695
    %v1575 = vpow.pop %v1574
    %v1576 = vsel %vm340, %v1561, 0.0
    %1577 = vadd.xlane.f32.xlu0 %v1576
    %v1578 = vpop.xlane.xlu0 %1577
    %v1579 = vsel %vm340, %v1563, 0.0
    %1580 = vadd.xlane.f32.xlu0 %v1579
    %v1581 = vpop.xlane.xlu0 %1580
    %v1582 = vsel %vm340, %v1565, 0.0
    %1583 = vadd.xlane.f32.xlu0 %v1582
    %v1584 = vpop.xlane.xlu0 %1583
    %v1585 = vsel %vm340, %v1567, 0.0
    %1586 = vadd.xlane.f32.xlu0 %v1585
    %v1587 = vpop.xlane.xlu0 %1586
    %v1588 = vsel %vm340, %v1569, 0.0
    %1589 = vadd.xlane.f32.xlu0 %v1588
    %v1590 = vpop.xlane.xlu0 %1589
    %v1591 = vsel %vm340, %v1571, 0.0
    %1592 = vadd.xlane.f32.xlu0 %v1591
    %v1593 = vpop.xlane.xlu0 %1592
    %v1594 = vsel %vm340, %v1573, 0.0
    %1595 = vadd.xlane.f32.xlu0 %v1594
    %v1596 = vpop.xlane.xlu0 %1595
    %v1597 = vsel %vm340, %v1575, 0.0
    %1598 = vadd.xlane.f32.xlu0 %v1597
    %v1599 = vpop.xlane.xlu0 %1598
    %v1600 = vrcp.pop %v1578
    %v1601 = vmul.f32 %v1578, %v1600
    %v1602 = vsub.f32 1.0, %v1601
    %v1603 = vmul.f32 %v1600, %v1602
    %v1604 = vadd.f32 %v1600, %v1603
    %vm1605 = vweird.f32 %v1578
    %vm1606 = vweird.f32 %v1600
    %vm1607 = vmor %vm1605, %vm1606
    %v1608 = vsel %vm1607, %v1600, %v1604
    %v1609 = vand.u32 2147483647, %v1578
    %vm1610 = vcmp.eq.f32.partialorder %v1609, 8.507059e+37
    %v1611 = vand.u32 %v1578, 2147483648
    %v1612 = vor.u32 1.1754944e-38, %v1611
    %v1613 = vsel %vm1610, %v1612, %v1608
    %v1614 = vmul.f32 %v1561, %v1613
    %v1615 = vrcp.pop %v1581
    %v1616 = vmul.f32 %v1581, %v1615
    %v1617 = vsub.f32 1.0, %v1616
    %v1618 = vmul.f32 %v1615, %v1617
    %v1619 = vadd.f32 %v1615, %v1618
    %vm1620 = vweird.f32 %v1581
    %vm1621 = vweird.f32 %v1615
    %vm1622 = vmor %vm1620, %vm1621
    %v1623 = vsel %vm1622, %v1615, %v1619
    %v1624 = vand.u32 2147483647, %v1581
    %vm1625 = vcmp.eq.f32.partialorder %v1624, 8.507059e+37
    %v1626 = vand.u32 %v1581, 2147483648
    %v1627 = vor.u32 1.1754944e-38, %v1626
    %v1628 = vsel %vm1625, %v1627, %v1623
    %v1629 = vmul.f32 %v1563, %v1628
    %v1630 = vrcp.pop %v1584
    %v1631 = vmul.f32 %v1584, %v1630
    %v1632 = vsub.f32 1.0, %v1631
    %v1633 = vmul.f32 %v1630, %v1632
    %v1634 = vadd.f32 %v1630, %v1633
    %vm1635 = vweird.f32 %v1584
    %vm1636 = vweird.f32 %v1630
    %vm1637 = vmor %vm1635, %vm1636
    %v1638 = vsel %vm1637, %v1630, %v1634
    %v1639 = vand.u32 2147483647, %v1584
    %vm1640 = vcmp.eq.f32.partialorder %v1639, 8.507059e+37
    %v1641 = vand.u32 %v1584, 2147483648
    %v1642 = vor.u32 1.1754944e-38, %v1641
    %v1643 = vsel %vm1640, %v1642, %v1638
    %v1644 = vmul.f32 %v1565, %v1643
    %v1645 = vrcp.pop %v1587
    %v1646 = vmul.f32 %v1587, %v1645
    %v1647 = vsub.f32 1.0, %v1646
    %v1648 = vmul.f32 %v1645, %v1647
    %v1649 = vadd.f32 %v1645, %v1648
    %vm1650 = vweird.f32 %v1587
    %vm1651 = vweird.f32 %v1645
    %vm1652 = vmor %vm1650, %vm1651
    %v1653 = vsel %vm1652, %v1645, %v1649
    %v1654 = vand.u32 2147483647, %v1587
    %vm1655 = vcmp.eq.f32.partialorder %v1654, 8.507059e+37
    %v1656 = vand.u32 %v1587, 2147483648
    %v1657 = vor.u32 1.1754944e-38, %v1656
    %v1658 = vsel %vm1655, %v1657, %v1653
    %v1659 = vmul.f32 %v1567, %v1658
    %v1660 = vrcp.pop %v1590
    %v1661 = vmul.f32 %v1590, %v1660
    %v1662 = vsub.f32 1.0, %v1661
    %v1663 = vmul.f32 %v1660, %v1662
    %v1664 = vadd.f32 %v1660, %v1663
    %vm1665 = vweird.f32 %v1590
    %vm1666 = vweird.f32 %v1660
    %vm1667 = vmor %vm1665, %vm1666
    %v1668 = vsel %vm1667, %v1660, %v1664
    %v1669 = vand.u32 2147483647, %v1590
    %vm1670 = vcmp.eq.f32.partialorder %v1669, 8.507059e+37
    %v1671 = vand.u32 %v1590, 2147483648
    %v1672 = vor.u32 1.1754944e-38, %v1671
    %v1673 = vsel %vm1670, %v1672, %v1668
    %v1674 = vmul.f32 %v1569, %v1673
    %v1675 = vrcp.pop %v1593
    %v1676 = vmul.f32 %v1593, %v1675
    %v1677 = vsub.f32 1.0, %v1676
    %v1678 = vmul.f32 %v1675, %v1677
    %v1679 = vadd.f32 %v1675, %v1678
    %vm1680 = vweird.f32 %v1593
    %vm1681 = vweird.f32 %v1675
    %vm1682 = vmor %vm1680, %vm1681
    %v1683 = vsel %vm1682, %v1675, %v1679
    %v1684 = vand.u32 2147483647, %v1593
    %vm1685 = vcmp.eq.f32.partialorder %v1684, 8.507059e+37
    %v1686 = vand.u32 %v1593, 2147483648
    %v1687 = vor.u32 1.1754944e-38, %v1686
    %v1688 = vsel %vm1685, %v1687, %v1683
    %v1689 = vmul.f32 %v1571, %v1688
    %v1690 = vrcp.pop %v1596
    %v1691 = vmul.f32 %v1596, %v1690
    %v1692 = vsub.f32 1.0, %v1691
    %v1693 = vmul.f32 %v1690, %v1692
    %v1694 = vadd.f32 %v1690, %v1693
    %vm1695 = vweird.f32 %v1596
    %vm1696 = vweird.f32 %v1690
    %vm1697 = vmor %vm1695, %vm1696
    %v1698 = vsel %vm1697, %v1690, %v1694
    %v1699 = vand.u32 2147483647, %v1596
    %vm1700 = vcmp.eq.f32.partialorder %v1699, 8.507059e+37
    %v1701 = vand.u32 %v1596, 2147483648
    %v1702 = vor.u32 1.1754944e-38, %v1701
    %v1703 = vsel %vm1700, %v1702, %v1698
    %v1704 = vmul.f32 %v1573, %v1703
    %v1705 = vrcp.pop %v1599
    %v1706 = vmul.f32 %v1599, %v1705
    %v1707 = vsub.f32 1.0, %v1706
    %v1708 = vmul.f32 %v1705, %v1707
    %v1709 = vadd.f32 %v1705, %v1708
    %vm1710 = vweird.f32 %v1599
    %vm1711 = vweird.f32 %v1705
    %vm1712 = vmor %vm1710, %vm1711
    %v1713 = vsel %vm1712, %v1705, %v1709
    %v1714 = vand.u32 2147483647, %v1599
    %vm1715 = vcmp.eq.f32.partialorder %v1714, 8.507059e+37
    %v1716 = vand.u32 %v1599, 2147483648
    %v1717 = vor.u32 1.1754944e-38, %v1716
    %v1718 = vsel %vm1715, %v1717, %v1713
    %v1719 = vmul.f32 %v1575, %v1718
    %v1721 = vsel %vm340, %v1614, 0
    %1723 = vmatpush.msra.mxu0 0.0
    %1724 = vmatpush.msra.mxu0 0.0
    %1725 = vmatpush.msra.mxu0 0.0
    %1726 = vmatpush.msra.mxu0 0.0
    %1727 = vmatpush.msra.mxu0 0.0
    %1728 = vmatpush.msra.mxu0 0.0
    %1729 = vmatpush.msra.mxu0 0.0
    %1730 = vmatpush.msra.mxu0 0.0
    %1731 = vmatpush.msra.mxu0 0.0
    %1732 = vmatpush.msra.mxu0 0.0
    %1733 = vmatpush.msra.mxu0 0.0
    %1734 = vmatpush.msra.mxu0 0.0
    %1735 = vmatpush.msra.mxu0 0.0
    %1736 = vmatpush.msra.mxu0 0.0
    %1737 = vmatpush.msra.mxu0 0.0
    %1738 = vmatpush.msra.mxu0 %v1283
    %1739 = vmatmul.f32.gmra.mxu0 %v1721
    %v1740 = vpop.f32.mrf.mxu0
    %v1741 = vadd.f32 0.0, %v1740
    %1742 = vdwg.mxu0
    %v1744 = vsel %vm340, %v1629, 0
    %1746 = vmatpush.msra.mxu0 0.0
    %1747 = vmatpush.msra.mxu0 0.0
    %1748 = vmatpush.msra.mxu0 0.0
    %1749 = vmatpush.msra.mxu0 0.0
    %1750 = vmatpush.msra.mxu0 0.0
    %1751 = vmatpush.msra.mxu0 0.0
    %1752 = vmatpush.msra.mxu0 0.0
    %1753 = vmatpush.msra.mxu0 0.0
    %1754 = vmatpush.msra.mxu0 0.0
    %1755 = vmatpush.msra.mxu0 0.0
    %1756 = vmatpush.msra.mxu0 0.0
    %1757 = vmatpush.msra.mxu0 0.0
    %1758 = vmatpush.msra.mxu0 0.0
    %1759 = vmatpush.msra.mxu0 0.0
    %1760 = vmatpush.msra.mxu0 0.0
    %1761 = vmatpush.msra.mxu0 %v1286
    %1762 = vmatmul.f32.gmra.mxu0 %v1744
    %v1763 = vpop.f32.mrf.mxu0
    %v1764 = vadd.f32 0.0, %v1763
    %1765 = vdwg.mxu0
    %v1767 = vsel %vm340, %v1644, 0
    %1769 = vmatpush.msra.mxu0 0.0
    %1770 = vmatpush.msra.mxu0 0.0
    %1771 = vmatpush.msra.mxu0 0.0
    %1772 = vmatpush.msra.mxu0 0.0
    %1773 = vmatpush.msra.mxu0 0.0
    %1774 = vmatpush.msra.mxu0 0.0
    %1775 = vmatpush.msra.mxu0 0.0
    %1776 = vmatpush.msra.mxu0 0.0
    %1777 = vmatpush.msra.mxu0 0.0
    %1778 = vmatpush.msra.mxu0 0.0
    %1779 = vmatpush.msra.mxu0 0.0
    %1780 = vmatpush.msra.mxu0 0.0
    %1781 = vmatpush.msra.mxu0 0.0
    %1782 = vmatpush.msra.mxu0 0.0
    %1783 = vmatpush.msra.mxu0 0.0
    %1784 = vmatpush.msra.mxu0 %v1319
    %1785 = vmatmul.f32.gmra.mxu0 %v1767
    %v1786 = vpop.f32.mrf.mxu0
    %v1787 = vadd.f32 0.0, %v1786
    %1788 = vdwg.mxu0
    %v1790 = vsel %vm340, %v1659, 0
    %1792 = vmatpush.msra.mxu0 0.0
    %1793 = vmatpush.msra.mxu0 0.0
    %1794 = vmatpush.msra.mxu0 0.0
    %1795 = vmatpush.msra.mxu0 0.0
    %1796 = vmatpush.msra.mxu0 0.0
    %1797 = vmatpush.msra.mxu0 0.0
    %1798 = vmatpush.msra.mxu0 0.0
    %1799 = vmatpush.msra.mxu0 0.0
    %1800 = vmatpush.msra.mxu0 0.0
    %1801 = vmatpush.msra.mxu0 0.0
    %1802 = vmatpush.msra.mxu0 0.0
    %1803 = vmatpush.msra.mxu0 0.0
    %1804 = vmatpush.msra.mxu0 0.0
    %1805 = vmatpush.msra.mxu0 0.0
    %1806 = vmatpush.msra.mxu0 0.0
    %1807 = vmatpush.msra.mxu0 %v1321
    %1808 = vmatmul.f32.gmra.mxu0 %v1790
    %v1809 = vpop.f32.mrf.mxu0
    %v1810 = vadd.f32 0.0, %v1809
    %1811 = vdwg.mxu0
    %v1813 = vsel %vm340, %v1674, 0
    %1815 = vmatpush.msra.mxu0 0.0
    %1816 = vmatpush.msra.mxu0 0.0
    %1817 = vmatpush.msra.mxu0 0.0
    %1818 = vmatpush.msra.mxu0 0.0
    %1819 = vmatpush.msra.mxu0 0.0
    %1820 = vmatpush.msra.mxu0 0.0
    %1821 = vmatpush.msra.mxu0 0.0
    %1822 = vmatpush.msra.mxu0 0.0
    %1823 = vmatpush.msra.mxu0 0.0
    %1824 = vmatpush.msra.mxu0 0.0
    %1825 = vmatpush.msra.mxu0 0.0
    %1826 = vmatpush.msra.mxu0 0.0
    %1827 = vmatpush.msra.mxu0 0.0
    %1828 = vmatpush.msra.mxu0 0.0
    %1829 = vmatpush.msra.mxu0 0.0
    %1830 = vmatpush.msra.mxu0 %v1325
    %1831 = vmatmul.f32.gmra.mxu0 %v1813
    %v1832 = vpop.f32.mrf.mxu0
    %v1833 = vadd.f32 0.0, %v1832
    %1834 = vdwg.mxu0
    %v1836 = vsel %vm340, %v1689, 0
    %1838 = vmatpush.msra.mxu0 0.0
    %1839 = vmatpush.msra.mxu0 0.0
    %1840 = vmatpush.msra.mxu0 0.0
    %1841 = vmatpush.msra.mxu0 0.0
    %1842 = vmatpush.msra.mxu0 0.0
    %1843 = vmatpush.msra.mxu0 0.0
    %1844 = vmatpush.msra.mxu0 0.0
    %1845 = vmatpush.msra.mxu0 0.0
    %1846 = vmatpush.msra.mxu0 0.0
    %1847 = vmatpush.msra.mxu0 0.0
    %1848 = vmatpush.msra.mxu0 0.0
    %1849 = vmatpush.msra.mxu0 0.0
    %1850 = vmatpush.msra.mxu0 0.0
    %1851 = vmatpush.msra.mxu0 0.0
    %1852 = vmatpush.msra.mxu0 0.0
    %1853 = vmatpush.msra.mxu0 %v1327
    %1854 = vmatmul.f32.gmra.mxu0 %v1836
    %v1855 = vpop.f32.mrf.mxu0
    %v1856 = vadd.f32 0.0, %v1855
    %1857 = vdwg.mxu0
    %v1859 = vsel %vm340, %v1704, 0
    %1861 = vmatpush.msra.mxu0 0.0
    %1862 = vmatpush.msra.mxu0 0.0
    %1863 = vmatpush.msra.mxu0 0.0
    %1864 = vmatpush.msra.mxu0 0.0
    %1865 = vmatpush.msra.mxu0 0.0
    %1866 = vmatpush.msra.mxu0 0.0
    %1867 = vmatpush.msra.mxu0 0.0
    %1868 = vmatpush.msra.mxu0 0.0
    %1869 = vmatpush.msra.mxu0 0.0
    %1870 = vmatpush.msra.mxu0 0.0
    %1871 = vmatpush.msra.mxu0 0.0
    %1872 = vmatpush.msra.mxu0 0.0
    %1873 = vmatpush.msra.mxu0 0.0
    %1874 = vmatpush.msra.mxu0 0.0
    %1875 = vmatpush.msra.mxu0 0.0
    %1876 = vmatpush.msra.mxu0 %v1331
    %1877 = vmatmul.f32.gmra.mxu0 %v1859
    %v1878 = vpop.f32.mrf.mxu0
    %v1879 = vadd.f32 0.0, %v1878
    %1880 = vdwg.mxu0
    %v1882 = vsel %vm340, %v1719, 0
    %1884 = vmatpush.msra.mxu0 0.0
    %1885 = vmatpush.msra.mxu0 0.0
    %1886 = vmatpush.msra.mxu0 0.0
    %1887 = vmatpush.msra.mxu0 0.0
    %1888 = vmatpush.msra.mxu0 0.0
    %1889 = vmatpush.msra.mxu0 0.0
    %1890 = vmatpush.msra.mxu0 0.0
    %1891 = vmatpush.msra.mxu0 0.0
    %1892 = vmatpush.msra.mxu0 0.0
    %1893 = vmatpush.msra.mxu0 0.0
    %1894 = vmatpush.msra.mxu0 0.0
    %1895 = vmatpush.msra.mxu0 0.0
    %1896 = vmatpush.msra.mxu0 0.0
    %1897 = vmatpush.msra.mxu0 0.0
    %1898 = vmatpush.msra.mxu0 0.0
    %1899 = vmatpush.msra.mxu0 %v1333
    %1900 = vmatmul.f32.gmra.mxu0 %v1882
    %v1901 = vpop.f32.mrf.mxu0
    %v1902 = vadd.f32 0.0, %v1901
    %1903 = vdwg.mxu0
    %1906 = vrot.lane.b32.xlu0 %v1787, 8
    %v1907 = vpop.permute.xlu0 %1906
    %1908 = vrot.lane.b32.xlu0 %v1810, 8
    %v1909 = vpop.permute.xlu0 %1908
    %1914 = vrot.lane.b32.xlu0 %v1833, 16
    %v1915 = vpop.permute.xlu0 %1914
    %1916 = vrot.lane.b32.xlu0 %v1856, 16
    %v1917 = vpop.permute.xlu0 %1916
    %1922 = vrot.lane.b32.xlu0 %v1879, 24
    %v1923 = vpop.permute.xlu0 %1922
    %1924 = vrot.lane.b32.xlu0 %v1902, 24
    %v1925 = vpop.permute.xlu0 %1924
    %v1928 = vsel %vm340, %v1741, %v1907
    %v1929 = vsel %vm340, %v1764, %v1909
    %v1930 = vsel %vm151, %v1928, %v1915
    %v1931 = vsel %vm151, %v1929, %v1917
    %v1932 = vsel %vm937, %v1930, %v1923
    %v1933 = vsel %vm937, %v1931, %v1925
    %s1934 = scalar_lea.vmem [#allocation3], 32
    %v1935 = vld [vmem:[%s1934] sm:$0xff]
    %v1936 = vld [vmem:[%s1934 + $0x8] sm:$0xff]
    %v1937 = vld [vmem:[%s1934 + $0x10] sm:$0xff]
    %v1938 = vld [vmem:[%s1934 + $0x18] sm:$0xff]
    %s1939 = scalar_lea.vmem %s10, 1
    %v1940 = vld [vmem:[%s1939] sm:$0x1]
    %v1942 = vperm.slane %v1940, 0
    %v1945 = vsel %vm194, %v1932, 0
    %v1948 = vsel %vm194, %v1933, 0
    %1950 = vmatpush.msra.mxu0 0.0
    %1951 = vmatpush.msra.mxu0 0.0
    %1952 = vmatpush.msra.mxu0 0.0
    %1953 = vmatpush.msra.mxu0 0.0
    %1954 = vmatpush.msra.mxu0 0.0
    %1955 = vmatpush.msra.mxu0 0.0
    %1956 = vmatpush.msra.mxu0 0.0
    %1957 = vmatpush.msra.mxu0 0.0
    %1958 = vmatpush.msra.mxu0 0.0
    %1959 = vmatpush.msra.mxu0 0.0
    %1960 = vmatpush.msra.mxu0 0.0
    %1961 = vmatpush.msra.mxu0 0.0
    %1962 = vmatpush.msra.mxu0 %v1938
    %1963 = vmatpush.msra.mxu0 %v1937
    %1964 = vmatpush.msra.mxu0 %v1936
    %1965 = vmatpush.msra.mxu0 %v1935
    %1966 = vmatmul.f32.gmra.mxu0 %v1945
    %v1967 = vpop.f32.mrf.mxu0
    %v1968 = vadd.f32 %v1942, %v1967
    %1969 = vmatmul.f32.gmra.mxu0 %v1948
    %v1970 = vpop.f32.mrf.mxu0
    %v1971 = vadd.f32 %v1942, %v1970
    %1972 = vdwg.mxu0
    %v1973 = vadd.f32 %v1179, %v1968
    %v1974 = vadd.f32 %v1180, %v1971
    %s1975 = scalar_lea.vmem %s11, 1
    %v1976 = vld [vmem:[%s1975] sm:$0x1]
    %s1977 = scalar_lea.vmem [#allocation5], 1
    %v1978 = vld [vmem:[%s1977] sm:$0x1]
    %v1979 = vsel %vm194, %v1973, 0.0
    %1980 = vadd.xlane.f32.xlu0 %v1979
    %v1981 = vpop.xlane.xlu0 %1980
    %v1982 = vsel %vm194, %v1974, 0.0
    %1983 = vadd.xlane.f32.xlu0 %v1982
    %v1984 = vpop.xlane.xlu0 %1983
    %v1985 = vmul.f32 %v1981, %v993
    %v1986 = vmul.f32 %v1984, %v993
    %v1987 = vsub.f32 %v1973, %v1985
    %v1988 = vsub.f32 %v1974, %v1986
    %v1989 = vmul.f32 %v1987, %v1987
    %v1990 = vmul.f32 %v1988, %v1988
    %v1991 = vsel %vm194, %v1989, 0.0
    %1992 = vadd.xlane.f32.xlu0 %v1991
    %v1993 = vpop.xlane.xlu0 %1992
    %v1994 = vsel %vm194, %v1990, 0.0
    %1995 = vadd.xlane.f32.xlu0 %v1994
    %v1996 = vpop.xlane.xlu0 %1995
    %v1997 = vmul.f32 %v1993, %v993
    %v1998 = vmul.f32 %v1996, %v993
    %v1999 = vadd.f32 %v1997, 1e-05
    %v2000 = vadd.f32 %v1998, 1e-05
    %v2001 = vrsqrt.pop %v1999
    %v2002 = vmul.f32 %v2001, %v1999
    %v2003 = vmul.f32 %v2002, %v2001
    %v2004 = vmul.f32 0.5, %v2003
    %v2005 = vsub.f32 1.5, %v2004
    %v2006 = vmul.f32 %v2001, %v2005
    %vm2007 = vweird.f32 %v1999
    %vm2008 = vweird.f32 %v2001
    %vm2009 = vmor %vm2007, %vm2008
    %v2010 = vsel %vm2009, %v2001, %v2006
    %v2011 = vrsqrt.pop %v2000
    %v2012 = vmul.f32 %v2011, %v2000
    %v2013 = vmul.f32 %v2012, %v2011
    %v2014 = vmul.f32 0.5, %v2013
    %v2015 = vsub.f32 1.5, %v2014
    %v2016 = vmul.f32 %v2011, %v2015
    %vm2017 = vweird.f32 %v2000
    %vm2018 = vweird.f32 %v2011
    %vm2019 = vmor %vm2017, %vm2018
    %v2020 = vsel %vm2019, %v2011, %v2016
    %v2021 = vmul.f32 %v1987, %v2010
    %v2022 = vmul.f32 %v1988, %v2020
    %v2024 = vperm.slane %v1976, 0
    %v2026 = vmul.f32 %v2021, %v2024
    %v2027 = vmul.f32 %v2022, %v2024
    %v2029 = vperm.slane %v1978, 0
    %v2031 = vadd.f32 %v2026, %v2029
    %v2032 = vadd.f32 %v2027, %v2029
    %s2033 = scalar_lea.vmem [#allocation7], 32
    %v2034 = vld [vmem:[%s2033] sm:$0xff]
    %v2035 = vld [vmem:[%s2033 + $0x8] sm:$0xff]
    %v2036 = vld [vmem:[%s2033 + $0x10] sm:$0xff]
    %v2037 = vld [vmem:[%s2033 + $0x18] sm:$0xff]
    %s2038 = scalar_lea.vmem %s14, 1
    %v2039 = vld [vmem:[%s2038] sm:$0x1]
    %v2041 = vperm.slane %v2039, 0
    %v2044 = vsel %vm194, %v2031, 0
    %v2047 = vsel %vm194, %v2032, 0
    %2049 = vmatpush.msra.mxu0 0.0
    %2050 = vmatpush.msra.mxu0 0.0
    %2051 = vmatpush.msra.mxu0 0.0
    %2052 = vmatpush.msra.mxu0 0.0
    %2053 = vmatpush.msra.mxu0 0.0
    %2054 = vmatpush.msra.mxu0 0.0
    %2055 = vmatpush.msra.mxu0 0.0
    %2056 = vmatpush.msra.mxu0 0.0
    %2057 = vmatpush.msra.mxu0 0.0
    %2058 = vmatpush.msra.mxu0 0.0
    %2059 = vmatpush.msra.mxu0 0.0
    %2060 = vmatpush.msra.mxu0 0.0
    %2061 = vmatpush.msra.mxu0 %v2037
    %2062 = vmatpush.msra.mxu0 %v2036
    %2063 = vmatpush.msra.mxu0 %v2035
    %2064 = vmatpush.msra.mxu0 %v2034
    %2065 = vmatmul.f32.gmra.mxu0 %v2044
    %v2066 = vpop.f32.mrf.mxu0
    %v2067 = vadd.f32 %v2041, %v2066
    %2068 = vmatmul.f32.gmra.mxu0 %v2047
    %v2069 = vpop.f32.mrf.mxu0
    %v2070 = vadd.f32 %v2041, %v2069
    %2071 = vdwg.mxu0
    %v2072 = vmax.f32 %v2067, 0.0
    %v2073 = vmax.f32 %v2070, 0.0
    %s2074 = scalar_lea.vmem %s15, 64
    %v2075 = vld [vmem:[%s2074] sm:$0xff]
    %v2076 = vld [vmem:[%s2074 + $0x8] sm:$0xff]
    %v2077 = vld [vmem:[%s2074 + $0x10] sm:$0xff]
    %v2078 = vld [vmem:[%s2074 + $0x18] sm:$0xff]
    %v2079 = vld [vmem:[%s2074 + $0x20] sm:$0xff]
    %v2080 = vld [vmem:[%s2074 + $0x28] sm:$0xff]
    %v2081 = vld [vmem:[%s2074 + $0x30] sm:$0xff]
    %v2082 = vld [vmem:[%s2074 + $0x38] sm:$0xff]
    %s2083 = scalar_lea.vmem %s16, 1
    %v2084 = vld [vmem:[%s2083] sm:$0x1]
    %v2086 = vperm.slane %v2084, 0
    %v2089 = vsel %vm1093, %v2072, 0
    %v2092 = vsel %vm1093, %v2073, 0
    %2094 = vmatpush.msra.mxu0 0.0
    %2095 = vmatpush.msra.mxu0 0.0
    %2096 = vmatpush.msra.mxu0 0.0
    %2097 = vmatpush.msra.mxu0 0.0
    %2098 = vmatpush.msra.mxu0 0.0
    %2099 = vmatpush.msra.mxu0 0.0
    %2100 = vmatpush.msra.mxu0 0.0
    %2101 = vmatpush.msra.mxu0 0.0
    %2102 = vmatpush.msra.mxu0 %v2082
    %2103 = vmatpush.msra.mxu0 %v2081
    %2104 = vmatpush.msra.mxu0 %v2080
    %2105 = vmatpush.msra.mxu0 %v2079
    %2106 = vmatpush.msra.mxu0 %v2078
    %2107 = vmatpush.msra.mxu0 %v2077
    %2108 = vmatpush.msra.mxu0 %v2076
    %2109 = vmatpush.msra.mxu0 %v2075
    %2110 = vmatmul.f32.gmra.mxu0 %v2089
    %v2111 = vpop.f32.mrf.mxu0
    %v2112 = vadd.f32 %v2086, %v2111
    %2113 = vmatmul.f32.gmra.mxu0 %v2092
    %v2114 = vpop.f32.mrf.mxu0
    %v2115 = vadd.f32 %v2086, %v2114
    %2116 = vdwg.mxu0
    %v2117 = vadd.f32 %v2031, %v2112
    %v2118 = vadd.f32 %v2032, %v2115
    %s2119 = scalar_lea.vmem %s17, 1
    %v2120 = vld [vmem:[%s2119] sm:$0x1]
    %s2121 = scalar_lea.vmem [#allocation8], 1
    %v2122 = vld [vmem:[%s2121] sm:$0x1]
    %v2123 = vsel %vm194, %v2117, 0.0
    %2124 = vadd.xlane.f32.xlu0 %v2123
    %v2125 = vpop.xlane.xlu0 %2124
    %v2126 = vsel %vm194, %v2118, 0.0
    %2127 = vadd.xlane.f32.xlu0 %v2126
    %v2128 = vpop.xlane.xlu0 %2127
    %v2129 = vmul.f32 %v2125, %v993
    %v2130 = vmul.f32 %v2128, %v993
    %v2131 = vsub.f32 %v2117, %v2129
    %v2132 = vsub.f32 %v2118, %v2130
    %v2133 = vmul.f32 %v2131, %v2131
    %v2134 = vmul.f32 %v2132, %v2132
    %v2135 = vsel %vm194, %v2133, 0.0
    %2136 = vadd.xlane.f32.xlu0 %v2135
    %v2137 = vpop.xlane.xlu0 %2136
    %v2138 = vsel %vm194, %v2134, 0.0
    %2139 = vadd.xlane.f32.xlu0 %v2138
    %v2140 = vpop.xlane.xlu0 %2139
    %v2141 = vmul.f32 %v2137, %v993
    %v2142 = vmul.f32 %v2140, %v993
    %v2143 = vadd.f32 %v2141, 1e-05
    %v2144 = vadd.f32 %v2142, 1e-05
    %v2145 = vrsqrt.pop %v2143
    %v2146 = vmul.f32 %v2145, %v2143
    %v2147 = vmul.f32 %v2146, %v2145
    %v2148 = vmul.f32 0.5, %v2147
    %v2149 = vsub.f32 1.5, %v2148
    %v2150 = vmul.f32 %v2145, %v2149
    %vm2151 = vweird.f32 %v2143
    %vm2152 = vweird.f32 %v2145
    %vm2153 = vmor %vm2151, %vm2152
    %v2154 = vsel %vm2153, %v2145, %v2150
    %v2155 = vrsqrt.pop %v2144
    %v2156 = vmul.f32 %v2155, %v2144
    %v2157 = vmul.f32 %v2156, %v2155
    %v2158 = vmul.f32 0.5, %v2157
    %v2159 = vsub.f32 1.5, %v2158
    %v2160 = vmul.f32 %v2155, %v2159
    %vm2161 = vweird.f32 %v2144
    %vm2162 = vweird.f32 %v2155
    %vm2163 = vmor %vm2161, %vm2162
    %v2164 = vsel %vm2163, %v2155, %v2160
    %v2165 = vmul.f32 %v2131, %v2154
    %v2166 = vmul.f32 %v2132, %v2164
    %v2168 = vperm.slane %v2120, 0
    %v2170 = vmul.f32 %v2165, %v2168
    %v2171 = vmul.f32 %v2166, %v2168
    %v2173 = vperm.slane %v2122, 0
    %v2175 = vadd.f32 %v2170, %v2173
    %v2176 = vadd.f32 %v2171, %v2173
    %v2177 = vsel %vm194, %v2175, 0.0
    %v2178 = vrot.slane %v2177, 4
    %v2179 = vadd.f32 %v2177, %v2178
    %v2180 = vrot.slane %v2179, 2
    %v2181 = vadd.f32 %v2179, %v2180
    %v2182 = vrot.slane %v2181, 1
    %v2183 = vadd.f32 %v2181, %v2182
    %v2184 = vsel %vm194, %v2176, 0.0
    %v2185 = vrot.slane %v2184, 4
    %v2186 = vadd.f32 %v2184, %v2185
    %v2187 = vrot.slane %v2186, 2
    %v2188 = vadd.f32 %v2186, %v2187
    %v2189 = vrot.slane %v2188, 1
    %v2190 = vadd.f32 %v2188, %v2189
    %v2191 = vmul.f32 %v2183, 0.125
    %v2192 = vmul.f32 %v2190, 0.125
    %v2193 = vld [vmem:[%s19] sm:$0x1]
    %v2195 = vperm.slane %v2193, 0
    %v2197 = vmul.f32 %v2191, %v2195
    %v2198 = vmul.f32 %v2192, %v2195
    %v2201 = vrot.slane %v2198, 7
    %vm2202 = vcmask 1041409
    %v2203 = vsel %vm2202, %v2201, %v2197
    %vm2205 = vcmask 254976
    %v2206 = vsel %vm2205, %v2203, 0.0
    %2207 = vadd.xlane.f32.xlu0 %v2206
    %v2208 = vpop.xlane.xlu0 %2207
    %v2209 = vld [vmem:[#allocation2] sm:$0x1]
    %v2211 = vperm.slane %v2209, 0
    %v2213 = vadd.f32 %v2208, %v2211
    %vm2214 = vcmask 1024
    %2215 = vst.msk [vmem:[%s21] sm:$0x3] %vm2214, %v2213
    // Predicated region
    $region102: #{tpu_custom_call.1} parent=1 // pred_check
      _
    $region103: #{tpu_custom_call.1} parent=1 // pred_check_branch
      %2217 = sbr.rel (0) target = $region105
    $region104: #{tpu_custom_call.1} parent=1 // pred_region
      _
    $region105: #{tpu_custom_call.1} parent=1 // pred_fallthru
      _
    // Predicated region
    $region106: #{tpu_custom_call.1} parent=1 // pred_check
      _
    $region107: #{tpu_custom_call.1} parent=1 // pred_check_branch
      %2219 = sbr.rel (0) target = $region109
    $region108: #{tpu_custom_call.1} parent=1 // pred_region
      _
    $region109: #{tpu_custom_call.1} parent=1 // pred_fallthru
      _
    %2220 = vsyncpa [#allocation4], 1
    %2221 = vsyncpa [#allocation6], 1
    %2222 = vsyncpa [#allocation9], 1

</llo_original>
